<compile_context>
chip_gen: v5e
topology: v5e:2x2
jax: 0.10.0
libtpu: 0.0.40
codegen_flags: <defaults>
</compile_context>

<pallas_src>
import functools
import math

import jax
import jax.numpy as jnp
import numpy as np
from jax.experimental import pallas as pl
from jax.experimental.pallas import tpu as pltpu


def _round_up(x, m):
    return ((x + m - 1) // m) * m


def _cdiv(a, b):
    return -(-a // b)


def _pick_vmem_limit():
    """Per-generation VMEM limit: ~64 MiB on v5e/v6e (128 MiB physical),
    ~44 MiB on v7x (64 MiB physical per TensorCore). Safe 40 MiB fallback."""
    try:
        info = pltpu.get_tpu_info()
        cap = int(getattr(info, "vmem_capacity_bytes", 0) or 0)
        if cap > 0:
            return int(min(64 << 20, (cap * 7) // 10))
    except Exception:
        pass
    return 40 << 20


def _choose_tm(n_rows, per_row_bytes, resident_bytes, sublane, vmem_limit):
    """Largest row tile whose double-buffered working set fits ~75% of the
    VMEM limit *after* subtracting tm-independent residents, then adjusted so
    the 1-D grid has >= 2 steps when possible (v7x megacore utilization)."""
    budget = int(0.75 * vmem_limit) - int(resident_bytes)
    budget = max(budget, per_row_bytes * sublane)        # always >= one minimal tile
    tm = budget // max(per_row_bytes, 1)
    tm = max(sublane, (tm // sublane) * sublane)
    tm = min(tm, 2048)                                   # diminishing returns past ~2K rows
    tm = min(tm, _round_up(n_rows, sublane))
    # Ensure at least 2 grid steps when the row count allows it (both v7x TCs busy).
    if n_rows > sublane and _round_up(n_rows, tm) // tm < 2:
        tm = max(sublane, min(tm, _round_up(_cdiv(n_rows, 2), sublane)))
    return int(tm)


def _split_table_bf16(table_f32):
    """Split an f32 table into bf16 hi/lo parts (hi + lo reconstructs to ~2^-17).
    The gather then runs as two native bf16 MXU passes driven by a bf16
    one-hot, independent of how the compiler decomposes f32 matmuls."""
    hi = table_f32.astype(jnp.bfloat16)
    lo = (table_f32 - hi.astype(jnp.float32)).astype(jnp.bfloat16)
    return hi, lo


def _ope_rowwise_kernel(idx_ref, pos_ref, tab_hi_ref, tab_lo_ref,
                        gamma_ref, beta_ref, out_ref,
                        *, eps, dh, split_store, use_take):
    # idx_ref:    (TM, 1)  int32           object indices for this row tile
    # pos_ref:    (TM, dh) or (TM, D)      position embeddings (half / full width)
    # tab_*_ref:  (MAX_OBJ_PAD, dh) bf16   hi/lo split of the embedding table (resident)
    # gamma/beta: (2, dh) f32              LayerNorm params pre-split into halves
    idx = idx_ref[...]
    tm = idx.shape[0]
    mop = tab_hi_ref.shape[0]
    d = out_ref.shape[-1]

    if use_take:
        # Large-table guard (max_obj_pad > 512): direct row gather instead of a
        # (TM, max_obj_pad) one-hot that would blow VMEM / the VALU slot.
        rows_idx = idx[:, 0]
        obj = (jnp.take(tab_hi_ref[...], rows_idx, axis=0).astype(jnp.float32)
               + jnp.take(tab_lo_ref[...], rows_idx, axis=0).astype(jnp.float32))
    else:
        iota = jax.lax.broadcasted_iota(jnp.int32, (tm, mop), 1)
        onehot = (idx == iota).astype(jnp.bfloat16)      # exact 0/1, native MXU dtype
        obj = (jnp.dot(onehot, tab_hi_ref[...], preferred_element_type=jnp.float32)
               + jnp.dot(onehot, tab_lo_ref[...], preferred_element_type=jnp.float32))

    pos = pos_ref[...].astype(jnp.float32)
    if not split_store:
        pos = pos[:, :dh]                                # fallback loaded full width

    # LayerNorm over the virtual concat [obj | pos] without materializing it:
    # combine the two halves' reductions analytically (torch eps, biased var).
    inv_d = 1.0 / d
    mean = (jnp.sum(obj, axis=-1, keepdims=True)
            + jnp.sum(pos, axis=-1, keepdims=True)) * inv_d
    c_obj = obj - mean
    c_pos = pos - mean
    var = (jnp.sum(c_obj * c_obj, axis=-1, keepdims=True)
           + jnp.sum(c_pos * c_pos, axis=-1, keepdims=True)) * inv_d
    rstd = jax.lax.rsqrt(var + eps)

    gm = gamma_ref[...]
    bt = beta_ref[...]
    lo_half = (c_obj * rstd * gm[0:1, :] + bt[0:1, :]).astype(out_ref.dtype)
    hi_half = (c_pos * rstd * gm[1:2, :] + bt[1:2, :]).astype(out_ref.dtype)

    if split_store:
        # dh % 128 == 0: both stores are unmasked and lane-aligned.
        out_ref[:, :dh] = lo_half
        out_ref[:, dh:] = hi_half
    else:
        out_ref[...] = jnp.concatenate([lo_half, hi_half], axis=-1)


def _ope_packed_kernel(idx_ref, pos_ref, btab_hi_ref, btab_lo_ref, pones_ref,
                       mask_ref, gamma_ref, beta_ref, out_ref,
                       *, eps, d, dh, g, mop):
    # Packs G logical rows per kernel row so the (TM, G*D) output store is a
    # full-width unmasked vst even when D < 128 / D % 128 != 0.
    #   idx_ref:    (TM, G)       int32
    #   pos_ref:    (TM, G*D)     G full-width position rows, concatenated
    #   btab_*_ref: (G*MOP, G*D)  bf16 block-diag table; block r at cols [r*D, r*D+dh)
    #   pones_ref:  (G*D, G*D)    bf16, 1.0 within each D-wide segment
    #   mask_ref:   (1, G*D)      f32, 1.0 on the pos half of each segment
    #   gamma/beta: (1, G*D)      f32, LayerNorm params tiled G times
    idx = idx_ref[...]
    pos = pos_ref[...].astype(jnp.float32)
    tm = idx.shape[0]
    gd = g * d
    gm_cols = g * mop

    # One 0/1 per object block and logical row; exactly G ones per kernel row.
    lane = jax.lax.broadcasted_iota(jnp.int32, (tm, gm_cols), 1)
    onehot = jnp.zeros((tm, gm_cols), jnp.float32)
    for r in range(g):
        onehot = onehot + (lane == (idx[:, r:r + 1] + r * mop)).astype(jnp.float32)
    onehot = onehot.astype(jnp.bfloat16)

    obj_placed = (jnp.dot(onehot, btab_hi_ref[...], preferred_element_type=jnp.float32)
                  + jnp.dot(onehot, btab_lo_ref[...], preferred_element_type=jnp.float32))

    # Shift each row's pos data right by dh lanes (unambiguous slice+concat roll);
    # the wrapped-around garbage lands on obj columns and is masked out.
    pos_shift = jnp.concatenate([pos[:, gd - dh:], pos[:, :gd - dh]], axis=1)
    combined = obj_placed + pos_shift * mask_ref[...]

    # Segmented LayerNorm: per-segment sums (and their broadcast back) via exact
    # bf16 hi/lo matmuls with a 0/1 ones-in-segment matrix.
    pones = pones_ref[...]
    inv_d = 1.0 / d

    def _seg_sum(x):
        x_hi = x.astype(jnp.bfloat16)
        x_lo = (x - x_hi.astype(jnp.float32)).astype(jnp.bfloat16)
        return (jnp.dot(x_hi, pones, preferred_element_type=jnp.float32)
                + jnp.dot(x_lo, pones, preferred_element_type=jnp.float32))

    mean = _seg_sum(combined) * inv_d
    cen = combined - mean
    var = _seg_sum(cen * cen) * inv_d
    rstd = jax.lax.rsqrt(var + eps)

    out_ref[...] = (cen * rstd * gamma_ref[...] + beta_ref[...]).astype(out_ref.dtype)


def object_position_encoding(object_idx, position_embeds, obj_table, gamma, beta,
                             *, eps=1e-5, tm=None, vmem_limit_bytes=None):
    """Pallas TPU implementation of ObjectPositionEncoding.forward (enable_ope=True)."""
    B, S, D = position_embeds.shape
    max_obj, dh = obj_table.shape
    assert D % 2 == 0 and dh == D // 2, "embedding table width must be d_model // 2"
    out_dtype = position_embeds.dtype
    osz = np.dtype(out_dtype).itemsize
    psz = np.dtype(position_embeds.dtype).itemsize
    rows = B * S

    vmem_limit = int(vmem_limit_bytes) if vmem_limit_bytes else _pick_vmem_limit()
    sublane = max(8, 32 // min(osz, psz))

    # Pad table rows to a multiple of 128 (clean MXU pass; invalid / padded
    # indices silently gather a zero row rather than erroring like torch).
    mop = _round_up(max_obj, 128)
    table_f32 = obj_table.astype(jnp.float32)
    if mop != max_obj:
        table_f32 = jnp.pad(table_f32, ((0, mop - max_obj), (0, 0)))
    use_take = mop > 512                       # guard the (TM, mop) one-hot

    gamma_f = gamma.reshape(D).astype(jnp.float32)
    beta_f = beta.reshape(D).astype(jnp.float32)
    idx1d = object_idx.reshape(rows).astype(jnp.int32)
    pos2d = position_embeds.reshape(rows, D)

    # ---- pick the kernel layout -----------------------------------------
    if dh % 128 == 0:
        path = "split"                         # half-width load + lane-aligned split stores
        g = 1
    else:
        g = 128 // math.gcd(D, 128)            # logical rows packed per kernel row
        gd = g * D
        resident_tabs = 2 * (g * mop) * gd * 2 + gd * gd * 2
        if (not use_take) and g <= 32 and resident_tabs <= (8 << 20):
            path = "packed"
        else:
            path = "fallback"

    def _user_tm(t):
        return max(sublane, (int(t) // sublane) * sublane)

    if path == "split":
        resident = (2 * mop * dh * 2 + 2 * 2 * dh * 4) * 2 + (1 << 20)
        per_row = (2 * 128 * 4 + 2 * dh * psz + 2 * D * osz
                   + ((0 if use_take else mop) + 3 * D + 2 * dh) * 4)
        tm_used = _choose_tm(rows, per_row, resident, sublane, vmem_limit) \
            if tm is None else _user_tm(tm)
        rows_pad = _round_up(rows, tm_used)

        idx2d = idx1d.reshape(rows, 1)
        pos_in = pos2d
        if rows_pad != rows:
            idx2d = jnp.pad(idx2d, ((0, rows_pad - rows), (0, 0)))
            pos_in = jnp.pad(pos_in, ((0, rows_pad - rows), (0, 0)))

        tab_hi, tab_lo = _split_table_bf16(table_f32)
        gamma2 = jnp.stack([gamma_f[:dh], gamma_f[dh:]])       # (2, dh), pre-split
        beta2 = jnp.stack([beta_f[:dh], beta_f[dh:]])

        kernel = functools.partial(_ope_rowwise_kernel, eps=eps, dh=dh,
                                   split_store=True, use_take=use_take)
        args = (idx2d, pos_in, tab_hi, tab_lo, gamma2, beta2)
        # NOTE: the (tm, dh) half-width pos block is a strided DMA (dh*psz
        # contiguous bytes per row); fine for f32 dh>=128, re-check on xprof for
        # narrow bf16 rows before relying on the 25% read-traffic saving.
        spec_descrs = [
            ((tm_used, 1), False),
            ((tm_used, dh), False),
            ((mop, dh), True),
            ((mop, dh), True),
            ((2, dh), True),
            ((2, dh), True),
        ]
        out_rows, out_cols = rows_pad, D
        bytes_in = rows * (4 + dh * psz)
        g_used = 1

    elif path == "packed":
        packed_rows = _cdiv(rows, g)
        resident = (2 * (g * mop) * gd * 2 + gd * gd * 2 + 3 * gd * 4) * 2 + (1 << 20)
        per_row = (2 * 128 * 4 + 2 * gd * psz + 2 * gd * osz
                   + (2 * g * mop + 8 * gd) * 4)
        tm_used = _choose_tm(packed_rows, per_row, resident, sublane, vmem_limit) \
            if tm is None else _user_tm(tm)
        prow_pad = _round_up(packed_rows, tm_used)
        rows_pad = prow_pad * g

        idxp, posp = idx1d, pos2d
        if rows_pad != rows:
            idxp = jnp.pad(idxp, (0, rows_pad - rows))
            posp = jnp.pad(posp, ((0, rows_pad - rows), (0, 0)))
        idxp = idxp.reshape(prow_pad, g)
        posp = posp.reshape(prow_pad, gd)                      # pure row-major reshape: free

        # Block-diagonal placed table: block r maps object o to cols [r*D, r*D+dh).
        btab = jnp.zeros((g * mop, gd), jnp.float32)
        for r in range(g):
            btab = btab.at[r * mop:(r + 1) * mop, r * D:r * D + dh].set(table_f32)
        btab_hi, btab_lo = _split_table_bf16(btab)

        seg_id = jnp.arange(gd, dtype=jnp.int32) // D
        pones = (seg_id[:, None] == seg_id[None, :]).astype(jnp.bfloat16)
        mask = ((jnp.arange(gd, dtype=jnp.int32) % D) >= dh).astype(jnp.float32).reshape(1, gd)
        gamma_t = jnp.tile(gamma_f, g).reshape(1, gd)
        beta_t = jnp.tile(beta_f, g).reshape(1, gd)

        kernel = functools.partial(_ope_packed_kernel, eps=eps, d=D, dh=dh, g=g, mop=mop)
        args = (idxp, posp, btab_hi, btab_lo, pones, mask, gamma_t, beta_t)
        spec_descrs = [
            ((tm_used, g), False),
            ((tm_used, gd), False),
            ((g * mop, gd), True),
            ((g * mop, gd), True),
            ((gd, gd), True),
            ((1, gd), True),
            ((1, gd), True),
            ((1, gd), True),
        ]
        out_rows, out_cols = prow_pad, gd
        bytes_in = rows * (4 + D * psz)
        g_used = g

    else:  # fallback
        # TODO(synk): extend the packed lane-dense layout to these shapes too
        # (very large G or huge object tables); this path keeps the correct but
        # masked-store, full-width-load variant.
        resident = (2 * mop * dh * 2 + 2 * 2 * dh * 4) * 2 + (1 << 20)
        per_row = (2 * 128 * 4 + 2 * D * psz + 2 * D * osz
                   + ((0 if use_take else mop) + 4 * D) * 4)
        tm_used = _choose_tm(rows, per_row, resident, sublane, vmem_limit) \
            if tm is None else _user_tm(tm)
        rows_pad = _round_up(rows, tm_used)

        idx2d = idx1d.reshape(rows, 1)
        pos_in = pos2d
        if rows_pad != rows:
            idx2d = jnp.pad(idx2d, ((0, rows_pad - rows), (0, 0)))
            pos_in = jnp.pad(pos_in, ((0, rows_pad - rows), (0, 0)))

        tab_hi, tab_lo = _split_table_bf16(table_f32)
        gamma2 = jnp.stack([gamma_f[:dh], gamma_f[dh:]])
        beta2 = jnp.stack([beta_f[:dh], beta_f[dh:]])

        kernel = functools.partial(_ope_rowwise_kernel, eps=eps, dh=dh,
                                   split_store=False, use_take=use_take)
        args = (idx2d, pos_in, tab_hi, tab_lo, gamma2, beta2)
        spec_descrs = [
            ((tm_used, 1), False),
            ((tm_used, D), False),
            ((mop, dh), True),
            ((mop, dh), True),
            ((2, dh), True),
            ((2, dh), True),
        ]
        out_rows, out_cols = rows_pad, D
        bytes_in = rows * (4 + D * psz)
        g_used = 1

    grid_n = out_rows // tm_used
    cost = pl.CostEstimate(
        flops=int(4 * rows * mop * dh + 12 * rows * D),
        transcendentals=int(rows),
        bytes_accessed=int(bytes_in + rows * D * osz + resident),
    )

    def _build_in_specs(single_buffer_residents):
        specs = []
        for shape, is_resident in spec_descrs:
            if is_resident:
                kwargs = {"pipeline_mode": pl.Buffered(1)} if single_buffer_residents else {}
                specs.append(pl.BlockSpec(shape, lambda i: (0, 0), **kwargs))
            else:
                specs.append(pl.BlockSpec(shape, lambda i: (i, 0)))
        return specs

    def _run(single_buffer_residents):
        return pl.pallas_call(
            kernel,
            out_shape=jax.ShapeDtypeStruct((out_rows, out_cols), out_dtype),
            grid_spec=pltpu.PrefetchScalarGridSpec(
                num_scalar_prefetch=0,
                grid=(grid_n,),
                in_specs=_build_in_specs(single_buffer_residents),
                out_specs=pl.BlockSpec((tm_used, out_cols), lambda i: (i, 0)),
            ),
            compiler_params=pltpu.CompilerParams(
                dimension_semantics=("parallel",),
                vmem_limit_bytes=vmem_limit),
            cost_estimate=cost,
        )(*args)

    try:
        out2d = _run(True)        # single-buffer the constant-index residents
    except Exception:
        out2d = _run(False)       # fall back to default double-buffering

    if g_used > 1:
        out2d = out2d.reshape(out_rows * g_used, D)
    if out2d.shape[0] != rows:
        out2d = out2d[:rows]
    return out2d.reshape(B, S, D)


def _reference(object_idx, position_embeds, obj_table, gamma, beta, eps=1e-5):
    """Pure-JAX reference mirroring the PyTorch forward."""
    d_model = position_embeds.shape[-1]
    obj_embeds = obj_table[object_idx]
    pos_half = position_embeds[..., : d_model // 2]
    combined = jnp.concatenate([obj_embeds, pos_half], axis=-1)
    mean = jnp.mean(combined, axis=-1, keepdims=True)
    var = jnp.mean((combined - mean) ** 2, axis=-1, keepdims=True)
    normed = (combined - mean) / jnp.sqrt(var + eps)
    return normed * gamma + beta


def _run_case(key, B, S, D, max_objects):
    k_idx, k_pos, k_tab = jax.random.split(key, 3)
    object_idx = jax.random.randint(k_idx, (B, S), 0, max_objects, dtype=jnp.int32)
    position_embeds = jax.random.normal(k_pos, (B, S, D), dtype=jnp.float32)

    # nn.Embedding(max_objects, D//2) with xavier_normal_ init.
    xavier_std = (2.0 / (max_objects + D // 2)) ** 0.5
    obj_table = xavier_std * jax.random.normal(k_tab, (max_objects, D // 2),
                                               dtype=jnp.float32)
    # nn.LayerNorm(D): weight=1, bias=0.
    gamma = jnp.ones((D,), dtype=jnp.float32)
    beta = jnp.zeros((D,), dtype=jnp.float32)

    out = object_position_encoding(object_idx, position_embeds, obj_table,
                                   gamma, beta)
    out = jax.block_until_ready(out)
    ref = _reference(object_idx, position_embeds, obj_table, gamma, beta)
    assert out.shape == (B, S, D)
    err = float(jnp.max(jnp.abs(out - ref)))
    assert err < 5e-4, f"mismatch vs reference at shape {(B, S, D)}: max abs err {err}"


if __name__ == "__main__":
    key = jax.random.PRNGKey(0)
    k1, k2 = jax.random.split(key)
    # Small shape from the module's forward; D % 128 != 0 exercises the new
    # packed lane-dense path (G = 4 logical rows per kernel row).
    _run_case(k1, B=2, S=8, D=32, max_objects=100)
    # dh % 128 == 0 exercises the half-load / split-store path with a 2-step
    # "parallel" grid (both v7x TensorCores get work).
    _run_case(k2, B=2, S=64, D=256, max_objects=100)
    print("KERNEL_OK")
</pallas_src>

<mosaic_0001>
module attributes {stable_mosaic.version = 11 : i64} {
  func.func @_ope_packed_kernel(%arg0: i32, %arg1: memref<8x4xi32, #tpu.memory_space<vmem>>, %arg2: memref<8x128xf32, #tpu.memory_space<vmem>>, %arg3: memref<512x128xbf16, #tpu.memory_space<vmem>>, %arg4: memref<512x128xbf16, #tpu.memory_space<vmem>>, %arg5: memref<128x128xbf16, #tpu.memory_space<vmem>>, %arg6: memref<1x128xf32, #tpu.memory_space<vmem>>, %arg7: memref<1x128xf32, #tpu.memory_space<vmem>>, %arg8: memref<1x128xf32, #tpu.memory_space<vmem>>, %arg9: memref<8x128xf32, #tpu.memory_space<vmem>>) attributes {dimension_semantics = [#tpu.dimension_semantics<parallel>], iteration_bounds = array<i64: 1>, scalar_prefetch = 0 : i64, scratch_operands = 0 : i64, tpu.core_type = #tpu.core_type<tc>, window_params = [{transform_indices = @transform_0, window_bounds = array<i64: 8, 4>}, {transform_indices = @transform_1, window_bounds = array<i64: 8, 128>}, {pipeline_mode = #tpu.pipeline_mode<synchronous>, transform_indices = @transform_2, window_bounds = array<i64: 512, 128>}, {pipeline_mode = #tpu.pipeline_mode<synchronous>, transform_indices = @transform_3, window_bounds = array<i64: 512, 128>}, {pipeline_mode = #tpu.pipeline_mode<synchronous>, transform_indices = @transform_4, window_bounds = array<i64: 128, 128>}, {pipeline_mode = #tpu.pipeline_mode<synchronous>, transform_indices = @transform_5, window_bounds = array<i64: 1, 128>}, {pipeline_mode = #tpu.pipeline_mode<synchronous>, transform_indices = @transform_6, window_bounds = array<i64: 1, 128>}, {pipeline_mode = #tpu.pipeline_mode<synchronous>, transform_indices = @transform_7, window_bounds = array<i64: 1, 128>}, {transform_indices = @transform_8, window_bounds = array<i64: 8, 128>}]} {
    %c0 = arith.constant 0 : index
    %c0_0 = arith.constant 0 : index
    %0 = vector.load %arg1[%c0, %c0_0] : memref<8x4xi32, #tpu.memory_space<vmem>>, vector<8x4xi32>
    %c0_1 = arith.constant 0 : index
    %c0_2 = arith.constant 0 : index
    %1 = vector.load %arg2[%c0_1, %c0_2] : memref<8x128xf32, #tpu.memory_space<vmem>>, vector<8x128xf32>
    %2 = tpu.iota {dimensions = array<i32: 1>} : vector<8x512xi32>
    %cst = arith.constant 0.000000e+00 : f32
    %3 = vector.broadcast %cst : f32 to vector<8x512xf32>
    %4 = vector.extract_strided_slice %0 {offsets = [0, 0], sizes = [8, 1], strides = [1, 1]} : vector<8x4xi32> to vector<8x1xi32>
    %c0_i32 = arith.constant 0 : i32
    %5 = vector.broadcast %c0_i32 : i32 to vector<8x1xi32>
    %6 = arith.addi %4, %5 : vector<8x1xi32>
    %7 = vector.broadcast %6 : vector<8x1xi32> to vector<8x512xi32>
    %8 = arith.cmpi eq, %2, %7 : vector<8x512xi32>
    %9 = arith.extui %8 : vector<8x512xi1> to vector<8x512xi32>
    %10 = arith.sitofp %9 : vector<8x512xi32> to vector<8x512xf32>
    %11 = arith.addf %3, %10 : vector<8x512xf32>
    %12 = vector.extract_strided_slice %0 {offsets = [0, 1], sizes = [8, 1], strides = [1, 1]} : vector<8x4xi32> to vector<8x1xi32>
    %c128_i32 = arith.constant 128 : i32
    %13 = vector.broadcast %c128_i32 : i32 to vector<8x1xi32>
    %14 = arith.addi %12, %13 : vector<8x1xi32>
    %15 = vector.broadcast %14 : vector<8x1xi32> to vector<8x512xi32>
    %16 = arith.cmpi eq, %2, %15 : vector<8x512xi32>
    %17 = arith.extui %16 : vector<8x512xi1> to vector<8x512xi32>
    %18 = arith.sitofp %17 : vector<8x512xi32> to vector<8x512xf32>
    %19 = arith.addf %11, %18 : vector<8x512xf32>
    %20 = vector.extract_strided_slice %0 {offsets = [0, 2], sizes = [8, 1], strides = [1, 1]} : vector<8x4xi32> to vector<8x1xi32>
    %c256_i32 = arith.constant 256 : i32
    %21 = vector.broadcast %c256_i32 : i32 to vector<8x1xi32>
    %22 = arith.addi %20, %21 : vector<8x1xi32>
    %23 = vector.broadcast %22 : vector<8x1xi32> to vector<8x512xi32>
    %24 = arith.cmpi eq, %2, %23 : vector<8x512xi32>
    %25 = arith.extui %24 : vector<8x512xi1> to vector<8x512xi32>
    %26 = arith.sitofp %25 : vector<8x512xi32> to vector<8x512xf32>
    %27 = arith.addf %19, %26 : vector<8x512xf32>
    %28 = vector.extract_strided_slice %0 {offsets = [0, 3], sizes = [8, 1], strides = [1, 1]} : vector<8x4xi32> to vector<8x1xi32>
    %c384_i32 = arith.constant 384 : i32
    %29 = vector.broadcast %c384_i32 : i32 to vector<8x1xi32>
    %30 = arith.addi %28, %29 : vector<8x1xi32>
    %31 = vector.broadcast %30 : vector<8x1xi32> to vector<8x512xi32>
    %32 = arith.cmpi eq, %2, %31 : vector<8x512xi32>
    %33 = arith.extui %32 : vector<8x512xi1> to vector<8x512xi32>
    %34 = arith.sitofp %33 : vector<8x512xi32> to vector<8x512xf32>
    %35 = arith.addf %27, %34 : vector<8x512xf32>
    %36 = arith.truncf %35 : vector<8x512xf32> to vector<8x512xbf16>
    %c0_3 = arith.constant 0 : index
    %c0_4 = arith.constant 0 : index
    %37 = vector.load %arg3[%c0_3, %c0_4] : memref<512x128xbf16, #tpu.memory_space<vmem>>, vector<512x128xbf16>
    %cst_5 = arith.constant dense<0.000000e+00> : vector<8x128xf32>
    %38 = tpu.matmul %36, %37, %cst_5 {dimension_numbers = #tpu.dot_dimension_numbers<[1], [0], [0], [1], [0, 0, 1, 1], [], []>} : vector<8x512xbf16>, vector<512x128xbf16>, vector<8x128xf32> -> vector<8x128xf32>
    %c0_6 = arith.constant 0 : index
    %c0_7 = arith.constant 0 : index
    %39 = vector.load %arg4[%c0_6, %c0_7] : memref<512x128xbf16, #tpu.memory_space<vmem>>, vector<512x128xbf16>
    %cst_8 = arith.constant dense<0.000000e+00> : vector<8x128xf32>
    %40 = tpu.matmul %36, %39, %cst_8 {dimension_numbers = #tpu.dot_dimension_numbers<[1], [0], [0], [1], [0, 0, 1, 1], [], []>} : vector<8x512xbf16>, vector<512x128xbf16>, vector<8x128xf32> -> vector<8x128xf32>
    %41 = arith.addf %38, %40 : vector<8x128xf32>
    %42 = vector.extract_strided_slice %1 {offsets = [0, 112], sizes = [8, 16], strides = [1, 1]} : vector<8x128xf32> to vector<8x16xf32>
    %43 = vector.extract_strided_slice %1 {offsets = [0, 0], sizes = [8, 112], strides = [1, 1]} : vector<8x128xf32> to vector<8x112xf32>
    %44 = tpu.concatenate %42, %43 in 1 : vector<8x16xf32>, vector<8x112xf32> -> vector<8x128xf32>
    %c0_9 = arith.constant 0 : index
    %c0_10 = arith.constant 0 : index
    %45 = vector.load %arg6[%c0_9, %c0_10] : memref<1x128xf32, #tpu.memory_space<vmem>>, vector<1x128xf32>
    %46 = vector.broadcast %45 : vector<1x128xf32> to vector<8x128xf32>
    %47 = arith.mulf %44, %46 : vector<8x128xf32>
    %48 = arith.addf %41, %47 : vector<8x128xf32>
    %c0_11 = arith.constant 0 : index
    %c0_12 = arith.constant 0 : index
    %49 = vector.load %arg5[%c0_11, %c0_12] : memref<128x128xbf16, #tpu.memory_space<vmem>>, vector<128x128xbf16>
    %50 = arith.truncf %48 : vector<8x128xf32> to vector<8x128xbf16>
    %51 = arith.extf %50 : vector<8x128xbf16> to vector<8x128xf32>
    %52 = arith.subf %48, %51 : vector<8x128xf32>
    %53 = arith.truncf %52 : vector<8x128xf32> to vector<8x128xbf16>
    %cst_13 = arith.constant dense<0.000000e+00> : vector<8x128xf32>
    %54 = tpu.matmul %50, %49, %cst_13 {dimension_numbers = #tpu.dot_dimension_numbers<[1], [0], [0], [1], [0, 0, 1, 1], [], []>} : vector<8x128xbf16>, vector<128x128xbf16>, vector<8x128xf32> -> vector<8x128xf32>
    %cst_14 = arith.constant dense<0.000000e+00> : vector<8x128xf32>
    %55 = tpu.matmul %53, %49, %cst_14 {dimension_numbers = #tpu.dot_dimension_numbers<[1], [0], [0], [1], [0, 0, 1, 1], [], []>} : vector<8x128xbf16>, vector<128x128xbf16>, vector<8x128xf32> -> vector<8x128xf32>
    %56 = arith.addf %54, %55 : vector<8x128xf32>
    %cst_15 = arith.constant 3.125000e-02 : f32
    %57 = vector.broadcast %cst_15 : f32 to vector<8x128xf32>
    %58 = arith.mulf %56, %57 : vector<8x128xf32>
    %59 = arith.subf %48, %58 : vector<8x128xf32>
    %60 = arith.mulf %59, %59 : vector<8x128xf32>
    %61 = arith.truncf %60 : vector<8x128xf32> to vector<8x128xbf16>
    %62 = arith.extf %61 : vector<8x128xbf16> to vector<8x128xf32>
    %63 = arith.subf %60, %62 : vector<8x128xf32>
    %64 = arith.truncf %63 : vector<8x128xf32> to vector<8x128xbf16>
    %cst_16 = arith.constant dense<0.000000e+00> : vector<8x128xf32>
    %65 = tpu.matmul %61, %49, %cst_16 {dimension_numbers = #tpu.dot_dimension_numbers<[1], [0], [0], [1], [0, 0, 1, 1], [], []>} : vector<8x128xbf16>, vector<128x128xbf16>, vector<8x128xf32> -> vector<8x128xf32>
    %cst_17 = arith.constant dense<0.000000e+00> : vector<8x128xf32>
    %66 = tpu.matmul %64, %49, %cst_17 {dimension_numbers = #tpu.dot_dimension_numbers<[1], [0], [0], [1], [0, 0, 1, 1], [], []>} : vector<8x128xbf16>, vector<128x128xbf16>, vector<8x128xf32> -> vector<8x128xf32>
    %67 = arith.addf %65, %66 : vector<8x128xf32>
    %cst_18 = arith.constant 3.125000e-02 : f32
    %68 = vector.broadcast %cst_18 : f32 to vector<8x128xf32>
    %69 = arith.mulf %67, %68 : vector<8x128xf32>
    %cst_19 = arith.constant 9.99999974E-6 : f32
    %70 = vector.broadcast %cst_19 : f32 to vector<8x128xf32>
    %71 = arith.addf %69, %70 : vector<8x128xf32>
    %72 = math.rsqrt %71 : vector<8x128xf32>
    %73 = arith.mulf %59, %72 : vector<8x128xf32>
    %c0_20 = arith.constant 0 : index
    %c0_21 = arith.constant 0 : index
    %74 = vector.load %arg7[%c0_20, %c0_21] : memref<1x128xf32, #tpu.memory_space<vmem>>, vector<1x128xf32>
    %75 = vector.broadcast %74 : vector<1x128xf32> to vector<8x128xf32>
    %76 = arith.mulf %73, %75 : vector<8x128xf32>
    %c0_22 = arith.constant 0 : index
    %c0_23 = arith.constant 0 : index
    %77 = vector.load %arg8[%c0_22, %c0_23] : memref<1x128xf32, #tpu.memory_space<vmem>>, vector<1x128xf32>
    %78 = vector.broadcast %77 : vector<1x128xf32> to vector<8x128xf32>
    %79 = arith.addf %76, %78 : vector<8x128xf32>
    %c0_24 = arith.constant 0 : index
    %c0_25 = arith.constant 0 : index
    %80 = vector.load %arg9[%c0_24, %c0_25] : memref<8x128xf32, #tpu.memory_space<vmem>>, vector<8x128xf32>
    tpu.vector_store %arg9[%c0_24, %c0_25], %79 {strides = array<i32>} : memref<8x128xf32, #tpu.memory_space<vmem>>, vector<8x128xf32>,
    return
  }
  func.func @transform_0(%arg0: i32) -> (i32, i32) {
    %c0_i32 = arith.constant 0 : i32
    %c0_i32_0 = arith.constant 0 : i32
    return %arg0, %c0_i32 : i32, i32
  }
  func.func @transform_1(%arg0: i32) -> (i32, i32) {
    %c0_i32 = arith.constant 0 : i32
    %c0_i32_0 = arith.constant 0 : i32
    return %arg0, %c0_i32 : i32, i32
  }
  func.func @transform_2(%arg0: i32) -> (i32, i32) {
    %c0_i32 = arith.constant 0 : i32
    %c0_i32_0 = arith.constant 0 : i32
    %c0_i32_1 = arith.constant 0 : i32
    return %c0_i32, %c0_i32_0 : i32, i32
  }
  func.func @transform_3(%arg0: i32) -> (i32, i32) {
    %c0_i32 = arith.constant 0 : i32
    %c0_i32_0 = arith.constant 0 : i32
    %c0_i32_1 = arith.constant 0 : i32
    return %c0_i32, %c0_i32_0 : i32, i32
  }
  func.func @transform_4(%arg0: i32) -> (i32, i32) {
    %c0_i32 = arith.constant 0 : i32
    %c0_i32_0 = arith.constant 0 : i32
    %c0_i32_1 = arith.constant 0 : i32
    return %c0_i32, %c0_i32_0 : i32, i32
  }
  func.func @transform_5(%arg0: i32) -> (i32, i32) {
    %c0_i32 = arith.constant 0 : i32
    %c0_i32_0 = arith.constant 0 : i32
    %c0_i32_1 = arith.constant 0 : i32
    return %c0_i32, %c0_i32_0 : i32, i32
  }
  func.func @transform_6(%arg0: i32) -> (i32, i32) {
    %c0_i32 = arith.constant 0 : i32
    %c0_i32_0 = arith.constant 0 : i32
    %c0_i32_1 = arith.constant 0 : i32
    return %c0_i32, %c0_i32_0 : i32, i32
  }
  func.func @transform_7(%arg0: i32) -> (i32, i32) {
    %c0_i32 = arith.constant 0 : i32
    %c0_i32_0 = arith.constant 0 : i32
    %c0_i32_1 = arith.constant 0 : i32
    return %c0_i32, %c0_i32_0 : i32, i32
  }
  func.func @transform_8(%arg0: i32) -> (i32, i32) {
    %c0_i32 = arith.constant 0 : i32
    %c0_i32_0 = arith.constant 0 : i32
    return %arg0, %c0_i32 : i32, i32
  }
}

module attributes {stable_mosaic.version = 11 : i64} {
  func.func @_ope_packed_kernel(%arg0: i32, %arg1: memref<8x4xi32, #tpu.memory_space<vmem>>, %arg2: memref<8x128xf32, #tpu.memory_space<vmem>>, %arg3: memref<512x128xbf16, #tpu.memory_space<vmem>>, %arg4: memref<512x128xbf16, #tpu.memory_space<vmem>>, %arg5: memref<128x128xbf16, #tpu.memory_space<vmem>>, %arg6: memref<1x128xf32, #tpu.memory_space<vmem>>, %arg7: memref<1x128xf32, #tpu.memory_space<vmem>>, %arg8: memref<1x128xf32, #tpu.memory_space<vmem>>, %arg9: memref<8x128xf32, #tpu.memory_space<vmem>>) attributes {dimension_semantics = [#tpu.dimension_semantics<parallel>], iteration_bounds = array<i64: 1>, scalar_prefetch = 0 : i64, scratch_operands = 0 : i64, tpu.core_type = #tpu.core_type<tc>, window_params = [{transform_indices = @transform_0, window_bounds = array<i64: 8, 4>}, {transform_indices = @transform_1, window_bounds = array<i64: 8, 128>}, {pipeline_mode = #tpu.pipeline_mode<synchronous>, transform_indices = @transform_2, window_bounds = array<i64: 512, 128>}, {pipeline_mode = #tpu.pipeline_mode<synchronous>, transform_indices = @transform_3, window_bounds = array<i64: 512, 128>}, {pipeline_mode = #tpu.pipeline_mode<synchronous>, transform_indices = @transform_4, window_bounds = array<i64: 128, 128>}, {pipeline_mode = #tpu.pipeline_mode<synchronous>, transform_indices = @transform_5, window_bounds = array<i64: 1, 128>}, {pipeline_mode = #tpu.pipeline_mode<synchronous>, transform_indices = @transform_6, window_bounds = array<i64: 1, 128>}, {pipeline_mode = #tpu.pipeline_mode<synchronous>, transform_indices = @transform_7, window_bounds = array<i64: 1, 128>}, {transform_indices = @transform_8, window_bounds = array<i64: 8, 128>}]} {
    %c0 = arith.constant 0 : index
    %c0_0 = arith.constant 0 : index
    %0 = vector.load %arg1[%c0, %c0_0] : memref<8x4xi32, #tpu.memory_space<vmem>>, vector<8x4xi32>
    %c0_1 = arith.constant 0 : index
    %c0_2 = arith.constant 0 : index
    %1 = vector.load %arg2[%c0_1, %c0_2] : memref<8x128xf32, #tpu.memory_space<vmem>>, vector<8x128xf32>
    %2 = tpu.iota {dimensions = array<i32: 1>} : vector<8x512xi32>
    %cst = arith.constant 0.000000e+00 : f32
    %3 = vector.broadcast %cst : f32 to vector<8x512xf32>
    %4 = vector.extract_strided_slice %0 {offsets = [0, 0], sizes = [8, 1], strides = [1, 1]} : vector<8x4xi32> to vector<8x1xi32>
    %c0_i32 = arith.constant 0 : i32
    %5 = vector.broadcast %c0_i32 : i32 to vector<8x1xi32>
    %6 = arith.addi %4, %5 : vector<8x1xi32>
    %7 = vector.broadcast %6 : vector<8x1xi32> to vector<8x512xi32>
    %8 = arith.cmpi eq, %2, %7 : vector<8x512xi32>
    %9 = arith.extui %8 : vector<8x512xi1> to vector<8x512xi32>
    %10 = arith.sitofp %9 : vector<8x512xi32> to vector<8x512xf32>
    %11 = arith.addf %3, %10 : vector<8x512xf32>
    %12 = vector.extract_strided_slice %0 {offsets = [0, 1], sizes = [8, 1], strides = [1, 1]} : vector<8x4xi32> to vector<8x1xi32>
    %c128_i32 = arith.constant 128 : i32
    %13 = vector.broadcast %c128_i32 : i32 to vector<8x1xi32>
    %14 = arith.addi %12, %13 : vector<8x1xi32>
    %15 = vector.broadcast %14 : vector<8x1xi32> to vector<8x512xi32>
    %16 = arith.cmpi eq, %2, %15 : vector<8x512xi32>
    %17 = arith.extui %16 : vector<8x512xi1> to vector<8x512xi32>
    %18 = arith.sitofp %17 : vector<8x512xi32> to vector<8x512xf32>
    %19 = arith.addf %11, %18 : vector<8x512xf32>
    %20 = vector.extract_strided_slice %0 {offsets = [0, 2], sizes = [8, 1], strides = [1, 1]} : vector<8x4xi32> to vector<8x1xi32>
    %c256_i32 = arith.constant 256 : i32
    %21 = vector.broadcast %c256_i32 : i32 to vector<8x1xi32>
    %22 = arith.addi %20, %21 : vector<8x1xi32>
    %23 = vector.broadcast %22 : vector<8x1xi32> to vector<8x512xi32>
    %24 = arith.cmpi eq, %2, %23 : vector<8x512xi32>
    %25 = arith.extui %24 : vector<8x512xi1> to vector<8x512xi32>
    %26 = arith.sitofp %25 : vector<8x512xi32> to vector<8x512xf32>
    %27 = arith.addf %19, %26 : vector<8x512xf32>
    %28 = vector.extract_strided_slice %0 {offsets = [0, 3], sizes = [8, 1], strides = [1, 1]} : vector<8x4xi32> to vector<8x1xi32>
    %c384_i32 = arith.constant 384 : i32
    %29 = vector.broadcast %c384_i32 : i32 to vector<8x1xi32>
    %30 = arith.addi %28, %29 : vector<8x1xi32>
    %31 = vector.broadcast %30 : vector<8x1xi32> to vector<8x512xi32>
    %32 = arith.cmpi eq, %2, %31 : vector<8x512xi32>
    %33 = arith.extui %32 : vector<8x512xi1> to vector<8x512xi32>
    %34 = arith.sitofp %33 : vector<8x512xi32> to vector<8x512xf32>
    %35 = arith.addf %27, %34 : vector<8x512xf32>
    %36 = arith.truncf %35 : vector<8x512xf32> to vector<8x512xbf16>
    %c0_3 = arith.constant 0 : index
    %c0_4 = arith.constant 0 : index
    %37 = vector.load %arg3[%c0_3, %c0_4] : memref<512x128xbf16, #tpu.memory_space<vmem>>, vector<512x128xbf16>
    %cst_5 = arith.constant dense<0.000000e+00> : vector<8x128xf32>
    %38 = tpu.matmul %36, %37, %cst_5 {dimension_numbers = #tpu.dot_dimension_numbers<[1], [0], [0], [1], [0, 0, 1, 1], [], []>} : vector<8x512xbf16>, vector<512x128xbf16>, vector<8x128xf32> -> vector<8x128xf32>
    %c0_6 = arith.constant 0 : index
    %c0_7 = arith.constant 0 : index
    %39 = vector.load %arg4[%c0_6, %c0_7] : memref<512x128xbf16, #tpu.memory_space<vmem>>, vector<512x128xbf16>
    %cst_8 = arith.constant dense<0.000000e+00> : vector<8x128xf32>
    %40 = tpu.matmul %36, %39, %cst_8 {dimension_numbers = #tpu.dot_dimension_numbers<[1], [0], [0], [1], [0, 0, 1, 1], [], []>} : vector<8x512xbf16>, vector<512x128xbf16>, vector<8x128xf32> -> vector<8x128xf32>
    %41 = arith.addf %38, %40 : vector<8x128xf32>
    %42 = vector.extract_strided_slice %1 {offsets = [0, 112], sizes = [8, 16], strides = [1, 1]} : vector<8x128xf32> to vector<8x16xf32>
    %43 = vector.extract_strided_slice %1 {offsets = [0, 0], sizes = [8, 112], strides = [1, 1]} : vector<8x128xf32> to vector<8x112xf32>
    %44 = tpu.concatenate %42, %43 in 1 : vector<8x16xf32>, vector<8x112xf32> -> vector<8x128xf32>
    %c0_9 = arith.constant 0 : index
    %c0_10 = arith.constant 0 : index
    %45 = vector.load %arg6[%c0_9, %c0_10] : memref<1x128xf32, #tpu.memory_space<vmem>>, vector<1x128xf32>
    %46 = vector.broadcast %45 : vector<1x128xf32> to vector<8x128xf32>
    %47 = arith.mulf %44, %46 : vector<8x128xf32>
    %48 = arith.addf %41, %47 : vector<8x128xf32>
    %c0_11 = arith.constant 0 : index
    %c0_12 = arith.constant 0 : index
    %49 = vector.load %arg5[%c0_11, %c0_12] : memref<128x128xbf16, #tpu.memory_space<vmem>>, vector<128x128xbf16>
    %50 = arith.truncf %48 : vector<8x128xf32> to vector<8x128xbf16>
    %51 = arith.extf %50 : vector<8x128xbf16> to vector<8x128xf32>
    %52 = arith.subf %48, %51 : vector<8x128xf32>
    %53 = arith.truncf %52 : vector<8x128xf32> to vector<8x128xbf16>
    %cst_13 = arith.constant dense<0.000000e+00> : vector<8x128xf32>
    %54 = tpu.matmul %50, %49, %cst_13 {dimension_numbers = #tpu.dot_dimension_numbers<[1], [0], [0], [1], [0, 0, 1, 1], [], []>} : vector<8x128xbf16>, vector<128x128xbf16>, vector<8x128xf32> -> vector<8x128xf32>
    %cst_14 = arith.constant dense<0.000000e+00> : vector<8x128xf32>
    %55 = tpu.matmul %53, %49, %cst_14 {dimension_numbers = #tpu.dot_dimension_numbers<[1], [0], [0], [1], [0, 0, 1, 1], [], []>} : vector<8x128xbf16>, vector<128x128xbf16>, vector<8x128xf32> -> vector<8x128xf32>
    %56 = arith.addf %54, %55 : vector<8x128xf32>
    %cst_15 = arith.constant 3.125000e-02 : f32
    %57 = vector.broadcast %cst_15 : f32 to vector<8x128xf32>
    %58 = arith.mulf %56, %57 : vector<8x128xf32>
    %59 = arith.subf %48, %58 : vector<8x128xf32>
    %60 = arith.mulf %59, %59 : vector<8x128xf32>
    %61 = arith.truncf %60 : vector<8x128xf32> to vector<8x128xbf16>
    %62 = arith.extf %61 : vector<8x128xbf16> to vector<8x128xf32>
    %63 = arith.subf %60, %62 : vector<8x128xf32>
    %64 = arith.truncf %63 : vector<8x128xf32> to vector<8x128xbf16>
    %cst_16 = arith.constant dense<0.000000e+00> : vector<8x128xf32>
    %65 = tpu.matmul %61, %49, %cst_16 {dimension_numbers = #tpu.dot_dimension_numbers<[1], [0], [0], [1], [0, 0, 1, 1], [], []>} : vector<8x128xbf16>, vector<128x128xbf16>, vector<8x128xf32> -> vector<8x128xf32>
    %cst_17 = arith.constant dense<0.000000e+00> : vector<8x128xf32>
    %66 = tpu.matmul %64, %49, %cst_17 {dimension_numbers = #tpu.dot_dimension_numbers<[1], [0], [0], [1], [0, 0, 1, 1], [], []>} : vector<8x128xbf16>, vector<128x128xbf16>, vector<8x128xf32> -> vector<8x128xf32>
    %67 = arith.addf %65, %66 : vector<8x128xf32>
    %cst_18 = arith.constant 3.125000e-02 : f32
    %68 = vector.broadcast %cst_18 : f32 to vector<8x128xf32>
    %69 = arith.mulf %67, %68 : vector<8x128xf32>
    %cst_19 = arith.constant 9.99999974E-6 : f32
    %70 = vector.broadcast %cst_19 : f32 to vector<8x128xf32>
    %71 = arith.addf %69, %70 : vector<8x128xf32>
    %72 = math.rsqrt %71 : vector<8x128xf32>
    %73 = arith.mulf %59, %72 : vector<8x128xf32>
    %c0_20 = arith.constant 0 : index
    %c0_21 = arith.constant 0 : index
    %74 = vector.load %arg7[%c0_20, %c0_21] : memref<1x128xf32, #tpu.memory_space<vmem>>, vector<1x128xf32>
    %75 = vector.broadcast %74 : vector<1x128xf32> to vector<8x128xf32>
    %76 = arith.mulf %73, %75 : vector<8x128xf32>
    %c0_22 = arith.constant 0 : index
    %c0_23 = arith.constant 0 : index
    %77 = vector.load %arg8[%c0_22, %c0_23] : memref<1x128xf32, #tpu.memory_space<vmem>>, vector<1x128xf32>
    %78 = vector.broadcast %77 : vector<1x128xf32> to vector<8x128xf32>
    %79 = arith.addf %76, %78 : vector<8x128xf32>
    %c0_24 = arith.constant 0 : index
    %c0_25 = arith.constant 0 : index
    %80 = vector.load %arg9[%c0_24, %c0_25] : memref<8x128xf32, #tpu.memory_space<vmem>>, vector<8x128xf32>
    tpu.vector_store %arg9[%c0_24, %c0_25], %79 {strides = array<i32>} : memref<8x128xf32, #tpu.memory_space<vmem>>, vector<8x128xf32>,
    return
  }
  func.func @transform_0(%arg0: i32) -> (i32, i32) {
    %c0_i32 = arith.constant 0 : i32
    %c0_i32_0 = arith.constant 0 : i32
    return %arg0, %c0_i32 : i32, i32
  }
  func.func @transform_1(%arg0: i32) -> (i32, i32) {
    %c0_i32 = arith.constant 0 : i32
    %c0_i32_0 = arith.constant 0 : i32
    return %arg0, %c0_i32 : i32, i32
  }
  func.func @transform_2(%arg0: i32) -> (i32, i32) {
    %c0_i32 = arith.constant 0 : i32
    %c0_i32_0 = arith.constant 0 : i32
    %c0_i32_1 = arith.constant 0 : i32
    return %c0_i32, %c0_i32_0 : i32, i32
  }
  func.func @transform_3(%arg0: i32) -> (i32, i32) {
    %c0_i32 = arith.constant 0 : i32
    %c0_i32_0 = arith.constant 0 : i32
    %c0_i32_1 = arith.constant 0 : i32
    return %c0_i32, %c0_i32_0 : i32, i32
  }
  func.func @transform_4(%arg0: i32) -> (i32, i32) {
    %c0_i32 = arith.constant 0 : i32
    %c0_i32_0 = arith.constant 0 : i32
    %c0_i32_1 = arith.constant 0 : i32
    return %c0_i32, %c0_i32_0 : i32, i32
  }
  func.func @transform_5(%arg0: i32) -> (i32, i32) {
    %c0_i32 = arith.constant 0 : i32
    %c0_i32_0 = arith.constant 0 : i32
    %c0_i32_1 = arith.constant 0 : i32
    return %c0_i32, %c0_i32_0 : i32, i32
  }
  func.func @transform_6(%arg0: i32) -> (i32, i32) {
    %c0_i32 = arith.constant 0 : i32
    %c0_i32_0 = arith.constant 0 : i32
    %c0_i32_1 = arith.constant 0 : i32
    return %c0_i32, %c0_i32_0 : i32, i32
  }
  func.func @transform_7(%arg0: i32) -> (i32, i32) {
    %c0_i32 = arith.constant 0 : i32
    %c0_i32_0 = arith.constant 0 : i32
    %c0_i32_1 = arith.constant 0 : i32
    return %c0_i32, %c0_i32_0 : i32, i32
  }
  func.func @transform_8(%arg0: i32) -> (i32, i32) {
    %c0_i32 = arith.constant 0 : i32
    %c0_i32_0 = arith.constant 0 : i32
    return %arg0, %c0_i32 : i32, i32
  }
}

</mosaic_0001>

<llo_original>
// kernel: tpu_custom_call.1
$region0: #{tpu_custom_call.1}
  #allocation0 [shape = 'u32[]', space=smem, size = 0x4, offset = 0x4, fixed_abs, tag = 'smem constant byte address 0x4 - core index']
  #allocation1 [shape = 'u32[72,128]{1,0:T(1,128)}', space=vmem, size = 0x9000, scoped, tag = 'internal scratch']
  %s0 = inlined_call_operand.vmem [shape: s32[8,4], index: 0, kind: input, shape index: {}]
  %s1 = inlined_call_operand.vmem [shape: f32[8,128], index: 1, kind: input, shape index: {}]
  %s2 = inlined_call_operand.hbm [shape: bf16[512,128], index: 2, kind: input, shape index: {}]
  %s3 = inlined_call_operand.hbm [shape: bf16[512,128], index: 3, kind: input, shape index: {}]
  %s4 = inlined_call_operand.hbm [shape: bf16[128,128], index: 4, kind: input, shape index: {}]
  %s5 = inlined_call_operand.vmem [shape: f32[1,128], index: 5, kind: input, shape index: {}]
  %s6 = inlined_call_operand.vmem [shape: f32[1,128], index: 6, kind: input, shape index: {}]
  %s7 = inlined_call_operand.vmem [shape: f32[1,128], index: 7, kind: input, shape index: {}]
  %s8 = inlined_call_operand.hbm [shape: f32[8,128], index: 8, kind: output, shape index: {}]
  %s9 = sld [smem:[#allocation0]]
  $region54: #{tpu_custom_call.1} parent=0
    _
  %s11 = ssub.s32 1, %s9
  %s12 = scalar_select 0, %s11, %s9
  $region1: #{tpu_custom_call.1} parent=0
    #allocation2 [shape = 'u8[131072]{0}', space=vmem, size = 0x20000, scoped, tag = 'input window, operand 2, single buffered']
    #allocation3 [shape = 's32[1]{0}', space=sflag, size = 0x4, scoped, tag = 'scoped memory for tpu_custom_call.1']
    #allocation4 [shape = 's32[1]{0}', space=sflag, size = 0x4, scoped, tag = 'scoped memory for tpu_custom_call.1']
    #allocation5 [shape = 'u8[131072]{0}', space=vmem, size = 0x20000, scoped, tag = 'input window, operand 3, single buffered']
    #allocation6 [shape = 's32[1]{0}', space=sflag, size = 0x4, scoped, tag = 'scoped memory for tpu_custom_call.1']
    #allocation7 [shape = 'u8[32768]{0}', space=vmem, size = 0x8000, scoped, tag = 'input window, operand 4, single buffered']
    #allocation8 [shape = 'u8[4096]{0}', space=vmem, size = 0x1000, scoped, tag = 'output window, operand 0, single buffered']
    %13 = vsyncpa [#allocation3], 0
    %14 = vsyncpa [#allocation6], 0
    %15 = vsyncpa [#allocation4], 0
    // Predicated region
    $region2: #{tpu_custom_call.1} parent=1 // pred_check
      _
    $region3: #{tpu_custom_call.1} parent=1 // pred_check_branch
      %17 = sbr.rel (0) target = $region5
    $region4: #{tpu_custom_call.1} parent=1 // pred_region
      _
    $region5: #{tpu_custom_call.1} parent=1 // pred_fallthru
      _
    // Predicated region
    $region6: #{tpu_custom_call.1} parent=1 // pred_check
      _
    $region7: #{tpu_custom_call.1} parent=1 // pred_check_branch
      %19 = sbr.rel (0) target = $region9
    $region8: #{tpu_custom_call.1} parent=1 // pred_region
      _
    $region9: #{tpu_custom_call.1} parent=1 // pred_fallthru
      _
    // Predicated region
    $region10: #{tpu_custom_call.1} parent=1 // pred_check
      _
    $region11: #{tpu_custom_call.1} parent=1 // pred_check_branch
      %21 = sbr.rel (0) target = $region13
    $region12: #{tpu_custom_call.1} parent=1 // pred_region
      %23 = vsyncadd [#allocation3], 0
      %s24 = sshll.u32 %s2, 4
      %s25 = int_to_ptr.hbm [resolvable:$true] %s24
      %s26 = sshll.u32 [#allocation2], 4
      %s27 = int_to_ptr.vmem [resolvable:$true] %s26
      %32 = dma.hbm_to_vmem [thread:$0]  %s25, 4096, %s27, [#allocation3], 64, 64, 4
    $region13: #{tpu_custom_call.1} parent=1 // pred_fallthru
      _
    // Predicated region
    $region14: #{tpu_custom_call.1} parent=1 // pred_check
      _
    $region15: #{tpu_custom_call.1} parent=1 // pred_check_branch
      %34 = sbr.rel (0) target = $region17
    $region16: #{tpu_custom_call.1} parent=1 // pred_region
      %36 = vsyncadd [#allocation6], 0
      %s37 = sshll.u32 %s3, 4
      %s38 = int_to_ptr.hbm [resolvable:$true] %s37
      %s39 = sshll.u32 [#allocation5], 4
      %s40 = int_to_ptr.vmem [resolvable:$true] %s39
      %45 = dma.hbm_to_vmem [thread:$0]  %s38, 4096, %s40, [#allocation6], 64, 64, 4
    $region17: #{tpu_custom_call.1} parent=1 // pred_fallthru
      _
    // Predicated region
    $region18: #{tpu_custom_call.1} parent=1 // pred_check
      _
    $region19: #{tpu_custom_call.1} parent=1 // pred_check_branch
      %47 = sbr.rel (0) target = $region21
    $region20: #{tpu_custom_call.1} parent=1 // pred_region
      %49 = vsyncadd [#allocation6], 0
      %s50 = sshll.u32 %s4, 4
      %s51 = int_to_ptr.hbm [resolvable:$true] %s50
      %s52 = sshll.u32 [#allocation7], 4
      %s53 = int_to_ptr.vmem [resolvable:$true] %s52
      %58 = dma.hbm_to_vmem [thread:$0]  %s51, 1024, %s53, [#allocation6], 64, 64, 4
    $region21: #{tpu_custom_call.1} parent=1 // pred_fallthru
      _
    // Predicated region
    $region22: #{tpu_custom_call.1} parent=1 // pred_check
      _
    $region23: #{tpu_custom_call.1} parent=1 // pred_check_branch
      %60 = sbr.rel (0) target = $region25
    $region24: #{tpu_custom_call.1} parent=1 // pred_region
      _
    $region25: #{tpu_custom_call.1} parent=1 // pred_fallthru
      _
    // Predicated region
    $region26: #{tpu_custom_call.1} parent=1 // pred_check
      _
    $region27: #{tpu_custom_call.1} parent=1 // pred_check_branch
      %62 = sbr.rel (0) target = $region29
    $region28: #{tpu_custom_call.1} parent=1 // pred_region
      _
    $region29: #{tpu_custom_call.1} parent=1 // pred_fallthru
      _
    // Predicated region
    $region30: #{tpu_custom_call.1} parent=1 // pred_check
      _
    $region31: #{tpu_custom_call.1} parent=1 // pred_check_branch
      %64 = sbr.rel (0) target = $region33
    $region32: #{tpu_custom_call.1} parent=1 // pred_region
      _
    $region33: #{tpu_custom_call.1} parent=1 // pred_fallthru
      _
    // Predicated region
    $region34: #{tpu_custom_call.1} parent=1 // pred_check
      _
    $region35: #{tpu_custom_call.1} parent=1 // pred_check_branch
      %66 = sbr.rel (0) target = $region37
    $region36: #{tpu_custom_call.1} parent=1 // pred_region
      %68 = dma.done [#allocation3], 4096
    $region37: #{tpu_custom_call.1} parent=1 // pred_fallthru
      _
    // Predicated region
    $region38: #{tpu_custom_call.1} parent=1 // pred_check
      _
    $region39: #{tpu_custom_call.1} parent=1 // pred_check_branch
      %70 = sbr.rel (0) target = $region41
    $region40: #{tpu_custom_call.1} parent=1 // pred_region
      %72 = dma.done [#allocation6], 4096
    $region41: #{tpu_custom_call.1} parent=1 // pred_fallthru
      _
    // Predicated region
    $region42: #{tpu_custom_call.1} parent=1 // pred_check
      _
    $region43: #{tpu_custom_call.1} parent=1 // pred_check_branch
      %74 = sbr.rel (0) target = $region45
    $region44: #{tpu_custom_call.1} parent=1 // pred_region
      %76 = dma.done [#allocation6], 1024
    $region45: #{tpu_custom_call.1} parent=1 // pred_fallthru
      _
    %v77 = vld [vmem:[%s0] sm:$0xff]
    %v78 = vld [vmem:[%s1] sm:$0xff]
    %v79 = vlaneseq
    %v80 = vand.u32 %v79, 127
    %v81 = vadd.s32 %v80, 128
    %v82 = vadd.s32 %v80, 256
    %v83 = vadd.s32 %v80, 384
    %84 = vset.pattern.permute.xlu0 0
    %85 = vperm.xlu0 %84, %v77
    %v86 = vpop.permute.xlu0 %85
    %vm87 = vcmp.eq.s32.totalorder %v80, %v86
    %vm88 = vcmp.eq.s32.totalorder %v81, %v86
    %vm89 = vcmp.eq.s32.totalorder %v82, %v86
    %vm90 = vcmp.eq.s32.totalorder %v83, %v86
    %v91 = vsel %vm87, 1, 0
    %v92 = vsel %vm88, 1, 0
    %v93 = vsel %vm89, 1, 0
    %v94 = vsel %vm90, 1, 0
    %v95 = vcvt.s32.f32 %v91
    %v96 = vcvt.s32.f32 %v92
    %v97 = vcvt.s32.f32 %v93
    %v98 = vcvt.s32.f32 %v94
    %v99 = vadd.f32 %v95, 0.0
    %v100 = vadd.f32 %v96, 0.0
    %v101 = vadd.f32 %v97, 0.0
    %v102 = vadd.f32 %v98, 0.0
    %v103 = vadd.s32 %v77, 128
    %104 = vset.pattern.permute.xlu0 1
    %105 = vperm.xlu0 %104, %v103
    %v106 = vpop.permute.xlu0 %105
    %vm107 = vcmp.eq.s32.totalorder %v80, %v106
    %vm108 = vcmp.eq.s32.totalorder %v81, %v106
    %vm109 = vcmp.eq.s32.totalorder %v82, %v106
    %vm110 = vcmp.eq.s32.totalorder %v83, %v106
    %v111 = vsel %vm107, 1, 0
    %v112 = vsel %vm108, 1, 0
    %v113 = vsel %vm109, 1, 0
    %v114 = vsel %vm110, 1, 0
    %v115 = vcvt.s32.f32 %v111
    %v116 = vcvt.s32.f32 %v112
    %v117 = vcvt.s32.f32 %v113
    %v118 = vcvt.s32.f32 %v114
    %v119 = vadd.f32 %v99, %v115
    %v120 = vadd.f32 %v100, %v116
    %v121 = vadd.f32 %v101, %v117
    %v122 = vadd.f32 %v102, %v118
    %v123 = vadd.s32 %v77, 256
    %124 = vset.pattern.permute.xlu0 2
    %125 = vperm.xlu0 %124, %v123
    %v126 = vpop.permute.xlu0 %125
    %vm127 = vcmp.eq.s32.totalorder %v80, %v126
    %vm128 = vcmp.eq.s32.totalorder %v81, %v126
    %vm129 = vcmp.eq.s32.totalorder %v82, %v126
    %vm130 = vcmp.eq.s32.totalorder %v83, %v126
    %v131 = vsel %vm127, 1, 0
    %v132 = vsel %vm128, 1, 0
    %v133 = vsel %vm129, 1, 0
    %v134 = vsel %vm130, 1, 0
    %v135 = vcvt.s32.f32 %v131
    %v136 = vcvt.s32.f32 %v132
    %v137 = vcvt.s32.f32 %v133
    %v138 = vcvt.s32.f32 %v134
    %v139 = vadd.f32 %v119, %v135
    %v140 = vadd.f32 %v120, %v136
    %v141 = vadd.f32 %v121, %v137
    %v142 = vadd.f32 %v122, %v138
    %v143 = vadd.s32 %v77, 384
    %144 = vset.pattern.permute.xlu0 3
    %145 = vperm.xlu0 %144, %v143
    %v146 = vpop.permute.xlu0 %145
    %vm147 = vcmp.eq.s32.totalorder %v80, %v146
    %vm148 = vcmp.eq.s32.totalorder %v81, %v146
    %vm149 = vcmp.eq.s32.totalorder %v82, %v146
    %vm150 = vcmp.eq.s32.totalorder %v83, %v146
    %v151 = vsel %vm147, 1, 0
    %v152 = vsel %vm148, 1, 0
    %v153 = vsel %vm149, 1, 0
    %v154 = vsel %vm150, 1, 0
    %v155 = vcvt.s32.f32 %v151
    %v156 = vcvt.s32.f32 %v152
    %v157 = vcvt.s32.f32 %v153
    %v158 = vcvt.s32.f32 %v154
    %v159 = vadd.f32 %v139, %v155
    %v160 = vadd.f32 %v140, %v156
    %v161 = vadd.f32 %v141, %v157
    %v162 = vadd.f32 %v142, %v158
    %v163 = vpack.c.bf16 %v159, %v159
    %v164 = vpack.c.bf16 %v160, %v160
    %v165 = vpack.c.bf16 %v161, %v161
    %v166 = vpack.c.bf16 %v162, %v162
    %v167 = vld [vmem:[#allocation2] sm:$0xf]
    %v168 = vld [vmem:[#allocation2 + $0x4] sm:$0xf]
    %v169 = vld [vmem:[#allocation2 + $0x8] sm:$0xf]
    %v170 = vld [vmem:[#allocation2 + $0xc] sm:$0xf]
    %v171 = vld [vmem:[#allocation2 + $0x10] sm:$0xf]
    %v172 = vld [vmem:[#allocation2 + $0x14] sm:$0xf]
    %v173 = vld [vmem:[#allocation2 + $0x18] sm:$0xf]
    %v174 = vld [vmem:[#allocation2 + $0x1c] sm:$0xf]
    %v175 = vld [vmem:[#allocation2 + $0x20] sm:$0xf]
    %v176 = vld [vmem:[#allocation2 + $0x24] sm:$0xf]
    %v177 = vld [vmem:[#allocation2 + $0x28] sm:$0xf]
    %v178 = vld [vmem:[#allocation2 + $0x2c] sm:$0xf]
    %v179 = vld [vmem:[#allocation2 + $0x30] sm:$0xf]
    %v180 = vld [vmem:[#allocation2 + $0x34] sm:$0xf]
    %v181 = vld [vmem:[#allocation2 + $0x38] sm:$0xf]
    %v182 = vld [vmem:[#allocation2 + $0x3c] sm:$0xf]
    %v183 = vld [vmem:[#allocation2 + $0x40] sm:$0xf]
    %v184 = vld [vmem:[#allocation2 + $0x44] sm:$0xf]
    %v185 = vld [vmem:[#allocation2 + $0x48] sm:$0xf]
    %v186 = vld [vmem:[#allocation2 + $0x4c] sm:$0xf]
    %v187 = vld [vmem:[#allocation2 + $0x50] sm:$0xf]
    %v188 = vld [vmem:[#allocation2 + $0x54] sm:$0xf]
    %v189 = vld [vmem:[#allocation2 + $0x58] sm:$0xf]
    %v190 = vld [vmem:[#allocation2 + $0x5c] sm:$0xf]
    %v191 = vld [vmem:[#allocation2 + $0x60] sm:$0xf]
    %v192 = vld [vmem:[#allocation2 + $0x64] sm:$0xf]
    %v193 = vld [vmem:[#allocation2 + $0x68] sm:$0xf]
    %v194 = vld [vmem:[#allocation2 + $0x6c] sm:$0xf]
    %v195 = vld [vmem:[#allocation2 + $0x70] sm:$0xf]
    %v196 = vld [vmem:[#allocation2 + $0x74] sm:$0xf]
    %v197 = vld [vmem:[#allocation2 + $0x78] sm:$0xf]
    %v198 = vld [vmem:[#allocation2 + $0x7c] sm:$0xf]
    %v199 = vld [vmem:[#allocation2 + $0x80] sm:$0xf]
    %v200 = vld [vmem:[#allocation2 + $0x84] sm:$0xf]
    %v201 = vld [vmem:[#allocation2 + $0x88] sm:$0xf]
    %v202 = vld [vmem:[#allocation2 + $0x8c] sm:$0xf]
    %v203 = vld [vmem:[#allocation2 + $0x90] sm:$0xf]
    %v204 = vld [vmem:[#allocation2 + $0x94] sm:$0xf]
    %v205 = vld [vmem:[#allocation2 + $0x98] sm:$0xf]
    %v206 = vld [vmem:[#allocation2 + $0x9c] sm:$0xf]
    %v207 = vld [vmem:[#allocation2 + $0xa0] sm:$0xf]
    %v208 = vld [vmem:[#allocation2 + $0xa4] sm:$0xf]
    %v209 = vld [vmem:[#allocation2 + $0xa8] sm:$0xf]
    %v210 = vld [vmem:[#allocation2 + $0xac] sm:$0xf]
    %v211 = vld [vmem:[#allocation2 + $0xb0] sm:$0xf]
    %v212 = vld [vmem:[#allocation2 + $0xb4] sm:$0xf]
    %v213 = vld [vmem:[#allocation2 + $0xb8] sm:$0xf]
    %v214 = vld [vmem:[#allocation2 + $0xbc] sm:$0xf]
    %v215 = vld [vmem:[#allocation2 + $0xc0] sm:$0xf]
    %v216 = vld [vmem:[#allocation2 + $0xc4] sm:$0xf]
    %v217 = vld [vmem:[#allocation2 + $0xc8] sm:$0xf]
    %v218 = vld [vmem:[#allocation2 + $0xcc] sm:$0xf]
    %v219 = vld [vmem:[#allocation2 + $0xd0] sm:$0xf]
    %v220 = vld [vmem:[#allocation2 + $0xd4] sm:$0xf]
    %v221 = vld [vmem:[#allocation2 + $0xd8] sm:$0xf]
    %v222 = vld [vmem:[#allocation2 + $0xdc] sm:$0xf]
    %v223 = vld [vmem:[#allocation2 + $0xe0] sm:$0xf]
    %v224 = vld [vmem:[#allocation2 + $0xe4] sm:$0xf]
    %v225 = vld [vmem:[#allocation2 + $0xe8] sm:$0xf]
    %v226 = vld [vmem:[#allocation2 + $0xec] sm:$0xf]
    %v227 = vld [vmem:[#allocation2 + $0xf0] sm:$0xf]
    %v228 = vld [vmem:[#allocation2 + $0xf4] sm:$0xf]
    %v229 = vld [vmem:[#allocation2 + $0xf8] sm:$0xf]
    %v230 = vld [vmem:[#allocation2 + $0xfc] sm:$0xf]
    %v231 = vld [vmem:[#allocation5] sm:$0xf]
    %v232 = vld [vmem:[#allocation5 + $0x4] sm:$0xf]
    %v233 = vld [vmem:[#allocation5 + $0x8] sm:$0xf]
    %v234 = vld [vmem:[#allocation5 + $0xc] sm:$0xf]
    %v235 = vld [vmem:[#allocation5 + $0x10] sm:$0xf]
    %v236 = vld [vmem:[#allocation5 + $0x14] sm:$0xf]
    %v237 = vld [vmem:[#allocation5 + $0x18] sm:$0xf]
    %v238 = vld [vmem:[#allocation5 + $0x1c] sm:$0xf]
    %v239 = vld [vmem:[#allocation5 + $0x20] sm:$0xf]
    %v240 = vld [vmem:[#allocation5 + $0x24] sm:$0xf]
    %v241 = vld [vmem:[#allocation5 + $0x28] sm:$0xf]
    %v242 = vld [vmem:[#allocation5 + $0x2c] sm:$0xf]
    %v243 = vld [vmem:[#allocation5 + $0x30] sm:$0xf]
    %v244 = vld [vmem:[#allocation5 + $0x34] sm:$0xf]
    %v245 = vld [vmem:[#allocation5 + $0x38] sm:$0xf]
    %v246 = vld [vmem:[#allocation5 + $0x3c] sm:$0xf]
    %v247 = vld [vmem:[#allocation5 + $0x40] sm:$0xf]
    %v248 = vld [vmem:[#allocation5 + $0x44] sm:$0xf]
    %v249 = vld [vmem:[#allocation5 + $0x48] sm:$0xf]
    %v250 = vld [vmem:[#allocation5 + $0x4c] sm:$0xf]
    %v251 = vld [vmem:[#allocation5 + $0x50] sm:$0xf]
    %v252 = vld [vmem:[#allocation5 + $0x54] sm:$0xf]
    %v253 = vld [vmem:[#allocation5 + $0x58] sm:$0xf]
    %v254 = vld [vmem:[#allocation5 + $0x5c] sm:$0xf]
    %v255 = vld [vmem:[#allocation5 + $0x60] sm:$0xf]
    %v256 = vld [vmem:[#allocation5 + $0x64] sm:$0xf]
    %v257 = vld [vmem:[#allocation5 + $0x68] sm:$0xf]
    %v258 = vld [vmem:[#allocation5 + $0x6c] sm:$0xf]
    %v259 = vld [vmem:[#allocation5 + $0x70] sm:$0xf]
    %v260 = vld [vmem:[#allocation5 + $0x74] sm:$0xf]
    %v261 = vld [vmem:[#allocation5 + $0x78] sm:$0xf]
    %v262 = vld [vmem:[#allocation5 + $0x7c] sm:$0xf]
    %v263 = vld [vmem:[#allocation5 + $0x80] sm:$0xf]
    %v264 = vld [vmem:[#allocation5 + $0x84] sm:$0xf]
    %v265 = vld [vmem:[#allocation5 + $0x88] sm:$0xf]
    %v266 = vld [vmem:[#allocation5 + $0x8c] sm:$0xf]
    %v267 = vld [vmem:[#allocation5 + $0x90] sm:$0xf]
    %v268 = vld [vmem:[#allocation5 + $0x94] sm:$0xf]
    %v269 = vld [vmem:[#allocation5 + $0x98] sm:$0xf]
    %v270 = vld [vmem:[#allocation5 + $0x9c] sm:$0xf]
    %v271 = vld [vmem:[#allocation5 + $0xa0] sm:$0xf]
    %v272 = vld [vmem:[#allocation5 + $0xa4] sm:$0xf]
    %v273 = vld [vmem:[#allocation5 + $0xa8] sm:$0xf]
    %v274 = vld [vmem:[#allocation5 + $0xac] sm:$0xf]
    %v275 = vld [vmem:[#allocation5 + $0xb0] sm:$0xf]
    %v276 = vld [vmem:[#allocation5 + $0xb4] sm:$0xf]
    %v277 = vld [vmem:[#allocation5 + $0xb8] sm:$0xf]
    %v278 = vld [vmem:[#allocation5 + $0xbc] sm:$0xf]
    %v279 = vld [vmem:[#allocation5 + $0xc0] sm:$0xf]
    %v280 = vld [vmem:[#allocation5 + $0xc4] sm:$0xf]
    %v281 = vld [vmem:[#allocation5 + $0xc8] sm:$0xf]
    %v282 = vld [vmem:[#allocation5 + $0xcc] sm:$0xf]
    %v283 = vld [vmem:[#allocation5 + $0xd0] sm:$0xf]
    %v284 = vld [vmem:[#allocation5 + $0xd4] sm:$0xf]
    %v285 = vld [vmem:[#allocation5 + $0xd8] sm:$0xf]
    %v286 = vld [vmem:[#allocation5 + $0xdc] sm:$0xf]
    %v287 = vld [vmem:[#allocation5 + $0xe0] sm:$0xf]
    %v288 = vld [vmem:[#allocation5 + $0xe4] sm:$0xf]
    %v289 = vld [vmem:[#allocation5 + $0xe8] sm:$0xf]
    %v290 = vld [vmem:[#allocation5 + $0xec] sm:$0xf]
    %v291 = vld [vmem:[#allocation5 + $0xf0] sm:$0xf]
    %v292 = vld [vmem:[#allocation5 + $0xf4] sm:$0xf]
    %v293 = vld [vmem:[#allocation5 + $0xf8] sm:$0xf]
    %v294 = vld [vmem:[#allocation5 + $0xfc] sm:$0xf]
    %v359 = vunpack.c.l.b16 %v231
    %v360 = vunpack.c.l.b16 %v232
    %v361 = vunpack.c.l.b16 %v233
    %v362 = vunpack.c.l.b16 %v234
    %v363 = vunpack.c.l.b16 %v235
    %v364 = vunpack.c.l.b16 %v236
    %v365 = vunpack.c.l.b16 %v237
    %v366 = vunpack.c.l.b16 %v238
    %v367 = vunpack.c.l.b16 %v239
    %v368 = vunpack.c.l.b16 %v240
    %v369 = vunpack.c.l.b16 %v241
    %v370 = vunpack.c.l.b16 %v242
    %v371 = vunpack.c.l.b16 %v243
    %v372 = vunpack.c.l.b16 %v244
    %v373 = vunpack.c.l.b16 %v245
    %v374 = vunpack.c.l.b16 %v246
    %v375 = vunpack.c.l.b16 %v247
    %v376 = vunpack.c.l.b16 %v248
    %v377 = vunpack.c.l.b16 %v249
    %v378 = vunpack.c.l.b16 %v250
    %v379 = vunpack.c.l.b16 %v251
    %v380 = vunpack.c.l.b16 %v252
    %v381 = vunpack.c.l.b16 %v253
    %v382 = vunpack.c.l.b16 %v254
    %v383 = vunpack.c.l.b16 %v255
    %v384 = vunpack.c.l.b16 %v256
    %v385 = vunpack.c.l.b16 %v257
    %v386 = vunpack.c.l.b16 %v258
    %v387 = vunpack.c.l.b16 %v259
    %v388 = vunpack.c.l.b16 %v260
    %v389 = vunpack.c.l.b16 %v261
    %v390 = vunpack.c.l.b16 %v262
    %v391 = vunpack.c.l.b16 %v263
    %v392 = vunpack.c.l.b16 %v264
    %v393 = vunpack.c.l.b16 %v265
    %v394 = vunpack.c.l.b16 %v266
    %v395 = vunpack.c.l.b16 %v267
    %v396 = vunpack.c.l.b16 %v268
    %v397 = vunpack.c.l.b16 %v269
    %v398 = vunpack.c.l.b16 %v270
    %v399 = vunpack.c.l.b16 %v271
    %v400 = vunpack.c.l.b16 %v272
    %v401 = vunpack.c.l.b16 %v273
    %v402 = vunpack.c.l.b16 %v274
    %v403 = vunpack.c.l.b16 %v275
    %v404 = vunpack.c.l.b16 %v276
    %v405 = vunpack.c.l.b16 %v277
    %v406 = vunpack.c.l.b16 %v278
    %v407 = vunpack.c.l.b16 %v279
    %v408 = vunpack.c.l.b16 %v280
    %v409 = vunpack.c.l.b16 %v281
    %v410 = vunpack.c.l.b16 %v282
    %v411 = vunpack.c.l.b16 %v283
    %v412 = vunpack.c.l.b16 %v284
    %v413 = vunpack.c.l.b16 %v285
    %v414 = vunpack.c.l.b16 %v286
    %v415 = vunpack.c.l.b16 %v287
    %v416 = vunpack.c.l.b16 %v288
    %v417 = vunpack.c.l.b16 %v289
    %v418 = vunpack.c.l.b16 %v290
    %v419 = vunpack.c.l.b16 %v291
    %v420 = vunpack.c.l.b16 %v292
    %v421 = vunpack.c.l.b16 %v293
    %v422 = vunpack.c.l.b16 %v294
    %v423 = vpack.c.b16 %v360, %v359
    %v424 = vpack.c.b16 %v362, %v361
    %v425 = vpack.c.b16 %v364, %v363
    %v426 = vpack.c.b16 %v366, %v365
    %v427 = vpack.c.b16 %v368, %v367
    %v428 = vpack.c.b16 %v370, %v369
    %v429 = vpack.c.b16 %v372, %v371
    %v430 = vpack.c.b16 %v374, %v373
    %v431 = vpack.c.b16 %v376, %v375
    %v432 = vpack.c.b16 %v378, %v377
    %v433 = vpack.c.b16 %v380, %v379
    %v434 = vpack.c.b16 %v382, %v381
    %v435 = vpack.c.b16 %v384, %v383
    %v436 = vpack.c.b16 %v386, %v385
    %v437 = vpack.c.b16 %v388, %v387
    %v438 = vpack.c.b16 %v390, %v389
    %v439 = vpack.c.b16 %v392, %v391
    %v440 = vpack.c.b16 %v394, %v393
    %v441 = vpack.c.b16 %v396, %v395
    %v442 = vpack.c.b16 %v398, %v397
    %v443 = vpack.c.b16 %v400, %v399
    %v444 = vpack.c.b16 %v402, %v401
    %v445 = vpack.c.b16 %v404, %v403
    %v446 = vpack.c.b16 %v406, %v405
    %v447 = vpack.c.b16 %v408, %v407
    %v448 = vpack.c.b16 %v410, %v409
    %v449 = vpack.c.b16 %v412, %v411
    %v450 = vpack.c.b16 %v414, %v413
    %v451 = vpack.c.b16 %v416, %v415
    %v452 = vpack.c.b16 %v418, %v417
    %v453 = vpack.c.b16 %v420, %v419
    %v454 = vpack.c.b16 %v422, %v421
    %487 = vmatpush.bf16.msra.mxu0 %v430
    %488 = vmatpush.bf16.msra.mxu0 %v429
    %489 = vmatpush.bf16.msra.mxu0 %v428
    %490 = vmatpush.bf16.msra.mxu0 %v427
    %491 = vmatpush.bf16.msra.mxu0 %v426
    %492 = vmatpush.bf16.msra.mxu0 %v425
    %493 = vmatpush.bf16.msra.mxu0 %v424
    %494 = vmatpush.bf16.msra.mxu0 %v423
    %495 = vmatmul.bf16.gmra.mxu0 %v163
    %v496 = vpop.f32.mrf.mxu0
    %v497 = vadd.f32 0.0, %v496
    %v498 = vpop.f32.mrf.mxu0
    %499 = vdwg.mxu0
    %500 = vmatpush.bf16.msra.mxu0 %v438
    %501 = vmatpush.bf16.msra.mxu0 %v437
    %502 = vmatpush.bf16.msra.mxu0 %v436
    %503 = vmatpush.bf16.msra.mxu0 %v435
    %504 = vmatpush.bf16.msra.mxu0 %v434
    %505 = vmatpush.bf16.msra.mxu0 %v433
    %506 = vmatpush.bf16.msra.mxu0 %v432
    %507 = vmatpush.bf16.msra.mxu0 %v431
    %508 = vmatmul.bf16.gmra.mxu0 %v164
    %v509 = vpop.f32.mrf.mxu0
    %v510 = vadd.f32 %v497, %v509
    %v511 = vpop.f32.mrf.mxu0
    %512 = vdwg.mxu0
    %513 = vmatpush.bf16.msra.mxu0 %v446
    %514 = vmatpush.bf16.msra.mxu0 %v445
    %515 = vmatpush.bf16.msra.mxu0 %v444
    %516 = vmatpush.bf16.msra.mxu0 %v443
    %517 = vmatpush.bf16.msra.mxu0 %v442
    %518 = vmatpush.bf16.msra.mxu0 %v441
    %519 = vmatpush.bf16.msra.mxu0 %v440
    %520 = vmatpush.bf16.msra.mxu0 %v439
    %521 = vmatmul.bf16.gmra.mxu0 %v165
    %v522 = vpop.f32.mrf.mxu0
    %v523 = vadd.f32 %v510, %v522
    %v524 = vpop.f32.mrf.mxu0
    %525 = vdwg.mxu0
    %526 = vmatpush.bf16.msra.mxu0 %v454
    %527 = vmatpush.bf16.msra.mxu0 %v453
    %528 = vmatpush.bf16.msra.mxu0 %v452
    %529 = vmatpush.bf16.msra.mxu0 %v451
    %530 = vmatpush.bf16.msra.mxu0 %v450
    %531 = vmatpush.bf16.msra.mxu0 %v449
    %532 = vmatpush.bf16.msra.mxu0 %v448
    %533 = vmatpush.bf16.msra.mxu0 %v447
    %534 = vmatmul.bf16.gmra.mxu0 %v166
    %v535 = vpop.f32.mrf.mxu0
    %v536 = vadd.f32 %v523, %v535
    %v537 = vpop.f32.mrf.mxu0
    %538 = vdwg.mxu0
    %v603 = vunpack.c.l.b16 %v167
    %v604 = vunpack.c.l.b16 %v168
    %v605 = vunpack.c.l.b16 %v169
    %v606 = vunpack.c.l.b16 %v170
    %v607 = vunpack.c.l.b16 %v171
    %v608 = vunpack.c.l.b16 %v172
    %v609 = vunpack.c.l.b16 %v173
    %v610 = vunpack.c.l.b16 %v174
    %v611 = vunpack.c.l.b16 %v175
    %v612 = vunpack.c.l.b16 %v176
    %v613 = vunpack.c.l.b16 %v177
    %v614 = vunpack.c.l.b16 %v178
    %v615 = vunpack.c.l.b16 %v179
    %v616 = vunpack.c.l.b16 %v180
    %v617 = vunpack.c.l.b16 %v181
    %v618 = vunpack.c.l.b16 %v182
    %v619 = vunpack.c.l.b16 %v183
    %v620 = vunpack.c.l.b16 %v184
    %v621 = vunpack.c.l.b16 %v185
    %v622 = vunpack.c.l.b16 %v186
    %v623 = vunpack.c.l.b16 %v187
    %v624 = vunpack.c.l.b16 %v188
    %v625 = vunpack.c.l.b16 %v189
    %v626 = vunpack.c.l.b16 %v190
    %v627 = vunpack.c.l.b16 %v191
    %v628 = vunpack.c.l.b16 %v192
    %v629 = vunpack.c.l.b16 %v193
    %v630 = vunpack.c.l.b16 %v194
    %v631 = vunpack.c.l.b16 %v195
    %v632 = vunpack.c.l.b16 %v196
    %v633 = vunpack.c.l.b16 %v197
    %v634 = vunpack.c.l.b16 %v198
    %v635 = vunpack.c.l.b16 %v199
    %v636 = vunpack.c.l.b16 %v200
    %v637 = vunpack.c.l.b16 %v201
    %v638 = vunpack.c.l.b16 %v202
    %v639 = vunpack.c.l.b16 %v203
    %v640 = vunpack.c.l.b16 %v204
    %v641 = vunpack.c.l.b16 %v205
    %v642 = vunpack.c.l.b16 %v206
    %v643 = vunpack.c.l.b16 %v207
    %v644 = vunpack.c.l.b16 %v208
    %v645 = vunpack.c.l.b16 %v209
    %v646 = vunpack.c.l.b16 %v210
    %v647 = vunpack.c.l.b16 %v211
    %v648 = vunpack.c.l.b16 %v212
    %v649 = vunpack.c.l.b16 %v213
    %v650 = vunpack.c.l.b16 %v214
    %v651 = vunpack.c.l.b16 %v215
    %v652 = vunpack.c.l.b16 %v216
    %v653 = vunpack.c.l.b16 %v217
    %v654 = vunpack.c.l.b16 %v218
    %v655 = vunpack.c.l.b16 %v219
    %v656 = vunpack.c.l.b16 %v220
    %v657 = vunpack.c.l.b16 %v221
    %v658 = vunpack.c.l.b16 %v222
    %v659 = vunpack.c.l.b16 %v223
    %v660 = vunpack.c.l.b16 %v224
    %v661 = vunpack.c.l.b16 %v225
    %v662 = vunpack.c.l.b16 %v226
    %v663 = vunpack.c.l.b16 %v227
    %v664 = vunpack.c.l.b16 %v228
    %v665 = vunpack.c.l.b16 %v229
    %v666 = vunpack.c.l.b16 %v230
    %v667 = vpack.c.b16 %v604, %v603
    %v668 = vpack.c.b16 %v606, %v605
    %v669 = vpack.c.b16 %v608, %v607
    %v670 = vpack.c.b16 %v610, %v609
    %v671 = vpack.c.b16 %v612, %v611
    %v672 = vpack.c.b16 %v614, %v613
    %v673 = vpack.c.b16 %v616, %v615
    %v674 = vpack.c.b16 %v618, %v617
    %v675 = vpack.c.b16 %v620, %v619
    %v676 = vpack.c.b16 %v622, %v621
    %v677 = vpack.c.b16 %v624, %v623
    %v678 = vpack.c.b16 %v626, %v625
    %v679 = vpack.c.b16 %v628, %v627
    %v680 = vpack.c.b16 %v630, %v629
    %v681 = vpack.c.b16 %v632, %v631
    %v682 = vpack.c.b16 %v634, %v633
    %v683 = vpack.c.b16 %v636, %v635
    %v684 = vpack.c.b16 %v638, %v637
    %v685 = vpack.c.b16 %v640, %v639
    %v686 = vpack.c.b16 %v642, %v641
    %v687 = vpack.c.b16 %v644, %v643
    %v688 = vpack.c.b16 %v646, %v645
    %v689 = vpack.c.b16 %v648, %v647
    %v690 = vpack.c.b16 %v650, %v649
    %v691 = vpack.c.b16 %v652, %v651
    %v692 = vpack.c.b16 %v654, %v653
    %v693 = vpack.c.b16 %v656, %v655
    %v694 = vpack.c.b16 %v658, %v657
    %v695 = vpack.c.b16 %v660, %v659
    %v696 = vpack.c.b16 %v662, %v661
    %v697 = vpack.c.b16 %v664, %v663
    %v698 = vpack.c.b16 %v666, %v665
    %731 = vmatpush.bf16.msra.mxu0 %v674
    %732 = vmatpush.bf16.msra.mxu0 %v673
    %733 = vmatpush.bf16.msra.mxu0 %v672
    %734 = vmatpush.bf16.msra.mxu0 %v671
    %735 = vmatpush.bf16.msra.mxu0 %v670
    %736 = vmatpush.bf16.msra.mxu0 %v669
    %737 = vmatpush.bf16.msra.mxu0 %v668
    %738 = vmatpush.bf16.msra.mxu0 %v667
    %739 = vmatmul.bf16.gmra.mxu0 %v163
    %v740 = vpop.f32.mrf.mxu0
    %v741 = vadd.f32 %v536, %v740
    %v742 = vpop.f32.mrf.mxu0
    %743 = vdwg.mxu0
    %744 = vmatpush.bf16.msra.mxu0 %v682
    %745 = vmatpush.bf16.msra.mxu0 %v681
    %746 = vmatpush.bf16.msra.mxu0 %v680
    %747 = vmatpush.bf16.msra.mxu0 %v679
    %748 = vmatpush.bf16.msra.mxu0 %v678
    %749 = vmatpush.bf16.msra.mxu0 %v677
    %750 = vmatpush.bf16.msra.mxu0 %v676
    %751 = vmatpush.bf16.msra.mxu0 %v675
    %752 = vmatmul.bf16.gmra.mxu0 %v164
    %v753 = vpop.f32.mrf.mxu0
    %v754 = vadd.f32 %v741, %v753
    %v755 = vpop.f32.mrf.mxu0
    %756 = vdwg.mxu0
    %757 = vmatpush.bf16.msra.mxu0 %v690
    %758 = vmatpush.bf16.msra.mxu0 %v689
    %759 = vmatpush.bf16.msra.mxu0 %v688
    %760 = vmatpush.bf16.msra.mxu0 %v687
    %761 = vmatpush.bf16.msra.mxu0 %v686
    %762 = vmatpush.bf16.msra.mxu0 %v685
    %763 = vmatpush.bf16.msra.mxu0 %v684
    %764 = vmatpush.bf16.msra.mxu0 %v683
    %765 = vmatmul.bf16.gmra.mxu0 %v165
    %v766 = vpop.f32.mrf.mxu0
    %v767 = vadd.f32 %v754, %v766
    %v768 = vpop.f32.mrf.mxu0
    %769 = vdwg.mxu0
    %770 = vmatpush.bf16.msra.mxu0 %v698
    %771 = vmatpush.bf16.msra.mxu0 %v697
    %772 = vmatpush.bf16.msra.mxu0 %v696
    %773 = vmatpush.bf16.msra.mxu0 %v695
    %774 = vmatpush.bf16.msra.mxu0 %v694
    %775 = vmatpush.bf16.msra.mxu0 %v693
    %776 = vmatpush.bf16.msra.mxu0 %v692
    %777 = vmatpush.bf16.msra.mxu0 %v691
    %778 = vmatmul.bf16.gmra.mxu0 %v166
    %v779 = vpop.f32.mrf.mxu0
    %v780 = vadd.f32 %v767, %v779
    %v781 = vpop.f32.mrf.mxu0
    %782 = vdwg.mxu0
    %784 = vrot.lane.b32.xlu0 %v78, 16
    %v785 = vpop.permute.xlu0 %784
    %v787 = vld [vmem:[%s5] sm:$0x1]
    %v789 = vperm.slane %v787, 0
    %v791 = vmul.f32 %v785, %v789
    %v792 = vadd.f32 %v780, %v791
    %v793 = vld [vmem:[#allocation7] sm:$0xf]
    %v794 = vld [vmem:[#allocation7 + $0x4] sm:$0xf]
    %v795 = vld [vmem:[#allocation7 + $0x8] sm:$0xf]
    %v796 = vld [vmem:[#allocation7 + $0xc] sm:$0xf]
    %v797 = vld [vmem:[#allocation7 + $0x10] sm:$0xf]
    %v798 = vld [vmem:[#allocation7 + $0x14] sm:$0xf]
    %v799 = vld [vmem:[#allocation7 + $0x18] sm:$0xf]
    %v800 = vld [vmem:[#allocation7 + $0x1c] sm:$0xf]
    %v801 = vld [vmem:[#allocation7 + $0x20] sm:$0xf]
    %v802 = vld [vmem:[#allocation7 + $0x24] sm:$0xf]
    %v803 = vld [vmem:[#allocation7 + $0x28] sm:$0xf]
    %v804 = vld [vmem:[#allocation7 + $0x2c] sm:$0xf]
    %v805 = vld [vmem:[#allocation7 + $0x30] sm:$0xf]
    %v806 = vld [vmem:[#allocation7 + $0x34] sm:$0xf]
    %v807 = vld [vmem:[#allocation7 + $0x38] sm:$0xf]
    %v808 = vld [vmem:[#allocation7 + $0x3c] sm:$0xf]
    %v809 = vpack.c.bf16 %v792, %v792
    %v810 = vunpack.c.l.bf16 %v809
    %v811 = vsub.f32 %v792, %v810
    %v812 = vpack.c.bf16 %v811, %v811
    %v829 = vunpack.c.l.b16 %v793
    %v830 = vunpack.c.l.b16 %v794
    %v831 = vunpack.c.l.b16 %v795
    %v832 = vunpack.c.l.b16 %v796
    %v833 = vunpack.c.l.b16 %v797
    %v834 = vunpack.c.l.b16 %v798
    %v835 = vunpack.c.l.b16 %v799
    %v836 = vunpack.c.l.b16 %v800
    %v837 = vunpack.c.l.b16 %v801
    %v838 = vunpack.c.l.b16 %v802
    %v839 = vunpack.c.l.b16 %v803
    %v840 = vunpack.c.l.b16 %v804
    %v841 = vunpack.c.l.b16 %v805
    %v842 = vunpack.c.l.b16 %v806
    %v843 = vunpack.c.l.b16 %v807
    %v844 = vunpack.c.l.b16 %v808
    %v845 = vpack.c.b16 %v830, %v829
    %v846 = vpack.c.b16 %v832, %v831
    %v847 = vpack.c.b16 %v834, %v833
    %v848 = vpack.c.b16 %v836, %v835
    %v849 = vpack.c.b16 %v838, %v837
    %v850 = vpack.c.b16 %v840, %v839
    %v851 = vpack.c.b16 %v842, %v841
    %v852 = vpack.c.b16 %v844, %v843
    %861 = vmatpush.bf16.msra.mxu0 %v852
    %862 = vmatpush.bf16.msra.mxu0 %v851
    %863 = vmatpush.bf16.msra.mxu0 %v850
    %864 = vmatpush.bf16.msra.mxu0 %v849
    %865 = vmatpush.bf16.msra.mxu0 %v848
    %866 = vmatpush.bf16.msra.mxu0 %v847
    %867 = vmatpush.bf16.msra.mxu0 %v846
    %868 = vmatpush.bf16.msra.mxu0 %v845
    %869 = vmatmul.bf16.gmra.mxu0 %v812
    %v870 = vpop.f32.mrf.mxu0
    %v871 = vadd.f32 0.0, %v870
    %v872 = vpop.f32.mrf.mxu0
    %873 = vdwg.mxu0
    %874 = vmatpush.bf16.msra.mxu0 %v852
    %875 = vmatpush.bf16.msra.mxu0 %v851
    %876 = vmatpush.bf16.msra.mxu0 %v850
    %877 = vmatpush.bf16.msra.mxu0 %v849
    %878 = vmatpush.bf16.msra.mxu0 %v848
    %879 = vmatpush.bf16.msra.mxu0 %v847
    %880 = vmatpush.bf16.msra.mxu0 %v846
    %881 = vmatpush.bf16.msra.mxu0 %v845
    %882 = vmatmul.bf16.gmra.mxu0 %v809
    %v883 = vpop.f32.mrf.mxu0
    %v884 = vadd.f32 %v871, %v883
    %v885 = vpop.f32.mrf.mxu0
    %886 = vdwg.mxu0
    %v887 = vmul.f32 %v884, 0.03125
    %v888 = vsub.f32 %v792, %v887
    %v889 = vmul.f32 %v888, %v888
    %v890 = vpack.c.bf16 %v889, %v889
    %v891 = vunpack.c.l.bf16 %v890
    %v892 = vsub.f32 %v889, %v891
    %v893 = vpack.c.bf16 %v892, %v892
    %894 = vmatpush.bf16.msra.mxu0 %v852
    %895 = vmatpush.bf16.msra.mxu0 %v851
    %896 = vmatpush.bf16.msra.mxu0 %v850
    %897 = vmatpush.bf16.msra.mxu0 %v849
    %898 = vmatpush.bf16.msra.mxu0 %v848
    %899 = vmatpush.bf16.msra.mxu0 %v847
    %900 = vmatpush.bf16.msra.mxu0 %v846
    %901 = vmatpush.bf16.msra.mxu0 %v845
    %902 = vmatmul.bf16.gmra.mxu0 %v893
    %v903 = vpop.f32.mrf.mxu0
    %v904 = vadd.f32 0.0, %v903
    %v905 = vpop.f32.mrf.mxu0
    %906 = vdwg.mxu0
    %907 = vmatpush.bf16.msra.mxu0 %v852
    %908 = vmatpush.bf16.msra.mxu0 %v851
    %909 = vmatpush.bf16.msra.mxu0 %v850
    %910 = vmatpush.bf16.msra.mxu0 %v849
    %911 = vmatpush.bf16.msra.mxu0 %v848
    %912 = vmatpush.bf16.msra.mxu0 %v847
    %913 = vmatpush.bf16.msra.mxu0 %v846
    %914 = vmatpush.bf16.msra.mxu0 %v845
    %915 = vmatmul.bf16.gmra.mxu0 %v890
    %v916 = vpop.f32.mrf.mxu0
    %v917 = vadd.f32 %v904, %v916
    %v918 = vpop.f32.mrf.mxu0
    %919 = vdwg.mxu0
    %v920 = vmul.f32 %v917, 0.03125
    %v921 = vadd.f32 %v920, 1e-05
    %v922 = vrsqrt.pop %v921
    %v923 = vmul.f32 %v922, %v921
    %v924 = vmul.f32 %v923, %v922
    %v925 = vmul.f32 0.5, %v924
    %v926 = vsub.f32 1.5, %v925
    %v927 = vmul.f32 %v922, %v926
    %vm928 = vweird.f32 %v921
    %vm929 = vweird.f32 %v922
    %vm930 = vmor %vm928, %vm929
    %v931 = vsel %vm930, %v922, %v927
    %v932 = vmul.f32 %v888, %v931
    %v933 = vld [vmem:[%s6] sm:$0x1]
    %v935 = vperm.slane %v933, 0
    %v937 = vmul.f32 %v932, %v935
    %v938 = vld [vmem:[%s7] sm:$0x1]
    %v940 = vperm.slane %v938, 0
    %v942 = vadd.f32 %v937, %v940
    %943 = vst [vmem:[#allocation8] sm:$0xff] %v942
    // Predicated region
    $region46: #{tpu_custom_call.1} parent=1 // pred_check
      _
    $region47: #{tpu_custom_call.1} parent=1 // pred_check_branch
      %945 = sbr.rel (0) target = $region49
    $region48: #{tpu_custom_call.1} parent=1 // pred_region
      %947 = vsyncadd [#allocation4], 0
      %s949 = sshll.u32 [#allocation8], 4
      %s950 = int_to_ptr.vmem [resolvable:$true] %s949
      %s951 = sshll.u32 %s8, 4
      %s952 = int_to_ptr.hbm [resolvable:$true] %s951
      %954 = dma.vmem_to_hbm [thread:$0]  %s950, 128, %s952, [#allocation4]
    $region49: #{tpu_custom_call.1} parent=1 // pred_fallthru
      _
    // Predicated region
    $region50: #{tpu_custom_call.1} parent=1 // pred_check
      _
    $region51: #{tpu_custom_call.1} parent=1 // pred_check_branch
      %956 = sbr.rel (0) target = $region53
    $region52: #{tpu_custom_call.1} parent=1 // pred_region
      %958 = dma.done [#allocation4], 128
    $region53: #{tpu_custom_call.1} parent=1 // pred_fallthru
      _
    %959 = vsyncpa [#allocation3], 1
    %960 = vsyncpa [#allocation6], 1
    %961 = vsyncpa [#allocation4], 1

// kernel: tpu_custom_call.1
$region0: #{tpu_custom_call.1}
  #allocation0 [shape = 'u32[]', space=smem, size = 0x4, offset = 0x4, fixed_abs, tag = 'smem constant byte address 0x4 - core index']
  #allocation1 [shape = 'u32[72,128]{1,0:T(1,128)}', space=vmem, size = 0x9000, scoped, tag = 'internal scratch']
  %s0 = inlined_call_operand.vmem [shape: s32[8,4], index: 0, kind: input, shape index: {}]
  %s1 = inlined_call_operand.vmem [shape: f32[8,128], index: 1, kind: input, shape index: {}]
  %s2 = inlined_call_operand.hbm [shape: bf16[512,128], index: 2, kind: input, shape index: {}]
  %s3 = inlined_call_operand.hbm [shape: bf16[512,128], index: 3, kind: input, shape index: {}]
  %s4 = inlined_call_operand.hbm [shape: bf16[128,128], index: 4, kind: input, shape index: {}]
  %s5 = inlined_call_operand.vmem [shape: f32[1,128], index: 5, kind: input, shape index: {}]
  %s6 = inlined_call_operand.vmem [shape: f32[1,128], index: 6, kind: input, shape index: {}]
  %s7 = inlined_call_operand.vmem [shape: f32[1,128], index: 7, kind: input, shape index: {}]
  %s8 = inlined_call_operand.hbm [shape: f32[8,128], index: 8, kind: output, shape index: {}]
  %s9 = sld [smem:[#allocation0]]
  $region54: #{tpu_custom_call.1} parent=0
    _
  %s11 = ssub.s32 1, %s9
  %s12 = scalar_select 0, %s11, %s9
  $region1: #{tpu_custom_call.1} parent=0
    #allocation2 [shape = 'u8[131072]{0}', space=vmem, size = 0x20000, scoped, tag = 'input window, operand 2, single buffered']
    #allocation3 [shape = 's32[1]{0}', space=sflag, size = 0x4, scoped, tag = 'scoped memory for tpu_custom_call.1']
    #allocation4 [shape = 's32[1]{0}', space=sflag, size = 0x4, scoped, tag = 'scoped memory for tpu_custom_call.1']
    #allocation5 [shape = 'u8[131072]{0}', space=vmem, size = 0x20000, scoped, tag = 'input window, operand 3, single buffered']
    #allocation6 [shape = 's32[1]{0}', space=sflag, size = 0x4, scoped, tag = 'scoped memory for tpu_custom_call.1']
    #allocation7 [shape = 'u8[32768]{0}', space=vmem, size = 0x8000, scoped, tag = 'input window, operand 4, single buffered']
    #allocation8 [shape = 'u8[4096]{0}', space=vmem, size = 0x1000, scoped, tag = 'output window, operand 0, single buffered']
    %13 = vsyncpa [#allocation3], 0
    %14 = vsyncpa [#allocation6], 0
    %15 = vsyncpa [#allocation4], 0
    // Predicated region
    $region2: #{tpu_custom_call.1} parent=1 // pred_check
      _
    $region3: #{tpu_custom_call.1} parent=1 // pred_check_branch
      %17 = sbr.rel (0) target = $region5
    $region4: #{tpu_custom_call.1} parent=1 // pred_region
      _
    $region5: #{tpu_custom_call.1} parent=1 // pred_fallthru
      _
    // Predicated region
    $region6: #{tpu_custom_call.1} parent=1 // pred_check
      _
    $region7: #{tpu_custom_call.1} parent=1 // pred_check_branch
      %19 = sbr.rel (0) target = $region9
    $region8: #{tpu_custom_call.1} parent=1 // pred_region
      _
    $region9: #{tpu_custom_call.1} parent=1 // pred_fallthru
      _
    // Predicated region
    $region10: #{tpu_custom_call.1} parent=1 // pred_check
      _
    $region11: #{tpu_custom_call.1} parent=1 // pred_check_branch
      %21 = sbr.rel (0) target = $region13
    $region12: #{tpu_custom_call.1} parent=1 // pred_region
      %23 = vsyncadd [#allocation3], 0
      %s24 = sshll.u32 %s2, 4
      %s25 = int_to_ptr.hbm [resolvable:$true] %s24
      %s26 = sshll.u32 [#allocation2], 4
      %s27 = int_to_ptr.vmem [resolvable:$true] %s26
      %32 = dma.hbm_to_vmem [thread:$0]  %s25, 4096, %s27, [#allocation3], 64, 64, 4
    $region13: #{tpu_custom_call.1} parent=1 // pred_fallthru
      _
    // Predicated region
    $region14: #{tpu_custom_call.1} parent=1 // pred_check
      _
    $region15: #{tpu_custom_call.1} parent=1 // pred_check_branch
      %34 = sbr.rel (0) target = $region17
    $region16: #{tpu_custom_call.1} parent=1 // pred_region
      %36 = vsyncadd [#allocation6], 0
      %s37 = sshll.u32 %s3, 4
      %s38 = int_to_ptr.hbm [resolvable:$true] %s37
      %s39 = sshll.u32 [#allocation5], 4
      %s40 = int_to_ptr.vmem [resolvable:$true] %s39
      %45 = dma.hbm_to_vmem [thread:$0]  %s38, 4096, %s40, [#allocation6], 64, 64, 4
    $region17: #{tpu_custom_call.1} parent=1 // pred_fallthru
      _
    // Predicated region
    $region18: #{tpu_custom_call.1} parent=1 // pred_check
      _
    $region19: #{tpu_custom_call.1} parent=1 // pred_check_branch
      %47 = sbr.rel (0) target = $region21
    $region20: #{tpu_custom_call.1} parent=1 // pred_region
      %49 = vsyncadd [#allocation6], 0
      %s50 = sshll.u32 %s4, 4
      %s51 = int_to_ptr.hbm [resolvable:$true] %s50
      %s52 = sshll.u32 [#allocation7], 4
      %s53 = int_to_ptr.vmem [resolvable:$true] %s52
      %58 = dma.hbm_to_vmem [thread:$0]  %s51, 1024, %s53, [#allocation6], 64, 64, 4
    $region21: #{tpu_custom_call.1} parent=1 // pred_fallthru
      _
    // Predicated region
    $region22: #{tpu_custom_call.1} parent=1 // pred_check
      _
    $region23: #{tpu_custom_call.1} parent=1 // pred_check_branch
      %60 = sbr.rel (0) target = $region25
    $region24: #{tpu_custom_call.1} parent=1 // pred_region
      _
    $region25: #{tpu_custom_call.1} parent=1 // pred_fallthru
      _
    // Predicated region
    $region26: #{tpu_custom_call.1} parent=1 // pred_check
      _
    $region27: #{tpu_custom_call.1} parent=1 // pred_check_branch
      %62 = sbr.rel (0) target = $region29
    $region28: #{tpu_custom_call.1} parent=1 // pred_region
      _
    $region29: #{tpu_custom_call.1} parent=1 // pred_fallthru
      _
    // Predicated region
    $region30: #{tpu_custom_call.1} parent=1 // pred_check
      _
    $region31: #{tpu_custom_call.1} parent=1 // pred_check_branch
      %64 = sbr.rel (0) target = $region33
    $region32: #{tpu_custom_call.1} parent=1 // pred_region
      _
    $region33: #{tpu_custom_call.1} parent=1 // pred_fallthru
      _
    // Predicated region
    $region34: #{tpu_custom_call.1} parent=1 // pred_check
      _
    $region35: #{tpu_custom_call.1} parent=1 // pred_check_branch
      %66 = sbr.rel (0) target = $region37
    $region36: #{tpu_custom_call.1} parent=1 // pred_region
      %68 = dma.done [#allocation3], 4096
    $region37: #{tpu_custom_call.1} parent=1 // pred_fallthru
      _
    // Predicated region
    $region38: #{tpu_custom_call.1} parent=1 // pred_check
      _
    $region39: #{tpu_custom_call.1} parent=1 // pred_check_branch
      %70 = sbr.rel (0) target = $region41
    $region40: #{tpu_custom_call.1} parent=1 // pred_region
      %72 = dma.done [#allocation6], 4096
    $region41: #{tpu_custom_call.1} parent=1 // pred_fallthru
      _
    // Predicated region
    $region42: #{tpu_custom_call.1} parent=1 // pred_check
      _
    $region43: #{tpu_custom_call.1} parent=1 // pred_check_branch
      %74 = sbr.rel (0) target = $region45
    $region44: #{tpu_custom_call.1} parent=1 // pred_region
      %76 = dma.done [#allocation6], 1024
    $region45: #{tpu_custom_call.1} parent=1 // pred_fallthru
      _
    %v77 = vld [vmem:[%s0] sm:$0xff]
    %v78 = vld [vmem:[%s1] sm:$0xff]
    %v79 = vlaneseq
    %v80 = vand.u32 %v79, 127
    %v81 = vadd.s32 %v80, 128
    %v82 = vadd.s32 %v80, 256
    %v83 = vadd.s32 %v80, 384
    %84 = vset.pattern.permute.xlu0 0
    %85 = vperm.xlu0 %84, %v77
    %v86 = vpop.permute.xlu0 %85
    %vm87 = vcmp.eq.s32.totalorder %v80, %v86
    %vm88 = vcmp.eq.s32.totalorder %v81, %v86
    %vm89 = vcmp.eq.s32.totalorder %v82, %v86
    %vm90 = vcmp.eq.s32.totalorder %v83, %v86
    %v91 = vsel %vm87, 1, 0
    %v92 = vsel %vm88, 1, 0
    %v93 = vsel %vm89, 1, 0
    %v94 = vsel %vm90, 1, 0
    %v95 = vcvt.s32.f32 %v91
    %v96 = vcvt.s32.f32 %v92
    %v97 = vcvt.s32.f32 %v93
    %v98 = vcvt.s32.f32 %v94
    %v99 = vadd.f32 %v95, 0.0
    %v100 = vadd.f32 %v96, 0.0
    %v101 = vadd.f32 %v97, 0.0
    %v102 = vadd.f32 %v98, 0.0
    %v103 = vadd.s32 %v77, 128
    %104 = vset.pattern.permute.xlu0 1
    %105 = vperm.xlu0 %104, %v103
    %v106 = vpop.permute.xlu0 %105
    %vm107 = vcmp.eq.s32.totalorder %v80, %v106
    %vm108 = vcmp.eq.s32.totalorder %v81, %v106
    %vm109 = vcmp.eq.s32.totalorder %v82, %v106
    %vm110 = vcmp.eq.s32.totalorder %v83, %v106
    %v111 = vsel %vm107, 1, 0
    %v112 = vsel %vm108, 1, 0
    %v113 = vsel %vm109, 1, 0
    %v114 = vsel %vm110, 1, 0
    %v115 = vcvt.s32.f32 %v111
    %v116 = vcvt.s32.f32 %v112
    %v117 = vcvt.s32.f32 %v113
    %v118 = vcvt.s32.f32 %v114
    %v119 = vadd.f32 %v99, %v115
    %v120 = vadd.f32 %v100, %v116
    %v121 = vadd.f32 %v101, %v117
    %v122 = vadd.f32 %v102, %v118
    %v123 = vadd.s32 %v77, 256
    %124 = vset.pattern.permute.xlu0 2
    %125 = vperm.xlu0 %124, %v123
    %v126 = vpop.permute.xlu0 %125
    %vm127 = vcmp.eq.s32.totalorder %v80, %v126
    %vm128 = vcmp.eq.s32.totalorder %v81, %v126
    %vm129 = vcmp.eq.s32.totalorder %v82, %v126
    %vm130 = vcmp.eq.s32.totalorder %v83, %v126
    %v131 = vsel %vm127, 1, 0
    %v132 = vsel %vm128, 1, 0
    %v133 = vsel %vm129, 1, 0
    %v134 = vsel %vm130, 1, 0
    %v135 = vcvt.s32.f32 %v131
    %v136 = vcvt.s32.f32 %v132
    %v137 = vcvt.s32.f32 %v133
    %v138 = vcvt.s32.f32 %v134
    %v139 = vadd.f32 %v119, %v135
    %v140 = vadd.f32 %v120, %v136
    %v141 = vadd.f32 %v121, %v137
    %v142 = vadd.f32 %v122, %v138
    %v143 = vadd.s32 %v77, 384
    %144 = vset.pattern.permute.xlu0 3
    %145 = vperm.xlu0 %144, %v143
    %v146 = vpop.permute.xlu0 %145
    %vm147 = vcmp.eq.s32.totalorder %v80, %v146
    %vm148 = vcmp.eq.s32.totalorder %v81, %v146
    %vm149 = vcmp.eq.s32.totalorder %v82, %v146
    %vm150 = vcmp.eq.s32.totalorder %v83, %v146
    %v151 = vsel %vm147, 1, 0
    %v152 = vsel %vm148, 1, 0
    %v153 = vsel %vm149, 1, 0
    %v154 = vsel %vm150, 1, 0
    %v155 = vcvt.s32.f32 %v151
    %v156 = vcvt.s32.f32 %v152
    %v157 = vcvt.s32.f32 %v153
    %v158 = vcvt.s32.f32 %v154
    %v159 = vadd.f32 %v139, %v155
    %v160 = vadd.f32 %v140, %v156
    %v161 = vadd.f32 %v141, %v157
    %v162 = vadd.f32 %v142, %v158
    %v163 = vpack.c.bf16 %v159, %v159
    %v164 = vpack.c.bf16 %v160, %v160
    %v165 = vpack.c.bf16 %v161, %v161
    %v166 = vpack.c.bf16 %v162, %v162
    %v167 = vld [vmem:[#allocation2] sm:$0xf]
    %v168 = vld [vmem:[#allocation2 + $0x4] sm:$0xf]
    %v169 = vld [vmem:[#allocation2 + $0x8] sm:$0xf]
    %v170 = vld [vmem:[#allocation2 + $0xc] sm:$0xf]
    %v171 = vld [vmem:[#allocation2 + $0x10] sm:$0xf]
    %v172 = vld [vmem:[#allocation2 + $0x14] sm:$0xf]
    %v173 = vld [vmem:[#allocation2 + $0x18] sm:$0xf]
    %v174 = vld [vmem:[#allocation2 + $0x1c] sm:$0xf]
    %v175 = vld [vmem:[#allocation2 + $0x20] sm:$0xf]
    %v176 = vld [vmem:[#allocation2 + $0x24] sm:$0xf]
    %v177 = vld [vmem:[#allocation2 + $0x28] sm:$0xf]
    %v178 = vld [vmem:[#allocation2 + $0x2c] sm:$0xf]
    %v179 = vld [vmem:[#allocation2 + $0x30] sm:$0xf]
    %v180 = vld [vmem:[#allocation2 + $0x34] sm:$0xf]
    %v181 = vld [vmem:[#allocation2 + $0x38] sm:$0xf]
    %v182 = vld [vmem:[#allocation2 + $0x3c] sm:$0xf]
    %v183 = vld [vmem:[#allocation2 + $0x40] sm:$0xf]
    %v184 = vld [vmem:[#allocation2 + $0x44] sm:$0xf]
    %v185 = vld [vmem:[#allocation2 + $0x48] sm:$0xf]
    %v186 = vld [vmem:[#allocation2 + $0x4c] sm:$0xf]
    %v187 = vld [vmem:[#allocation2 + $0x50] sm:$0xf]
    %v188 = vld [vmem:[#allocation2 + $0x54] sm:$0xf]
    %v189 = vld [vmem:[#allocation2 + $0x58] sm:$0xf]
    %v190 = vld [vmem:[#allocation2 + $0x5c] sm:$0xf]
    %v191 = vld [vmem:[#allocation2 + $0x60] sm:$0xf]
    %v192 = vld [vmem:[#allocation2 + $0x64] sm:$0xf]
    %v193 = vld [vmem:[#allocation2 + $0x68] sm:$0xf]
    %v194 = vld [vmem:[#allocation2 + $0x6c] sm:$0xf]
    %v195 = vld [vmem:[#allocation2 + $0x70] sm:$0xf]
    %v196 = vld [vmem:[#allocation2 + $0x74] sm:$0xf]
    %v197 = vld [vmem:[#allocation2 + $0x78] sm:$0xf]
    %v198 = vld [vmem:[#allocation2 + $0x7c] sm:$0xf]
    %v199 = vld [vmem:[#allocation2 + $0x80] sm:$0xf]
    %v200 = vld [vmem:[#allocation2 + $0x84] sm:$0xf]
    %v201 = vld [vmem:[#allocation2 + $0x88] sm:$0xf]
    %v202 = vld [vmem:[#allocation2 + $0x8c] sm:$0xf]
    %v203 = vld [vmem:[#allocation2 + $0x90] sm:$0xf]
    %v204 = vld [vmem:[#allocation2 + $0x94] sm:$0xf]
    %v205 = vld [vmem:[#allocation2 + $0x98] sm:$0xf]
    %v206 = vld [vmem:[#allocation2 + $0x9c] sm:$0xf]
    %v207 = vld [vmem:[#allocation2 + $0xa0] sm:$0xf]
    %v208 = vld [vmem:[#allocation2 + $0xa4] sm:$0xf]
    %v209 = vld [vmem:[#allocation2 + $0xa8] sm:$0xf]
    %v210 = vld [vmem:[#allocation2 + $0xac] sm:$0xf]
    %v211 = vld [vmem:[#allocation2 + $0xb0] sm:$0xf]
    %v212 = vld [vmem:[#allocation2 + $0xb4] sm:$0xf]
    %v213 = vld [vmem:[#allocation2 + $0xb8] sm:$0xf]
    %v214 = vld [vmem:[#allocation2 + $0xbc] sm:$0xf]
    %v215 = vld [vmem:[#allocation2 + $0xc0] sm:$0xf]
    %v216 = vld [vmem:[#allocation2 + $0xc4] sm:$0xf]
    %v217 = vld [vmem:[#allocation2 + $0xc8] sm:$0xf]
    %v218 = vld [vmem:[#allocation2 + $0xcc] sm:$0xf]
    %v219 = vld [vmem:[#allocation2 + $0xd0] sm:$0xf]
    %v220 = vld [vmem:[#allocation2 + $0xd4] sm:$0xf]
    %v221 = vld [vmem:[#allocation2 + $0xd8] sm:$0xf]
    %v222 = vld [vmem:[#allocation2 + $0xdc] sm:$0xf]
    %v223 = vld [vmem:[#allocation2 + $0xe0] sm:$0xf]
    %v224 = vld [vmem:[#allocation2 + $0xe4] sm:$0xf]
    %v225 = vld [vmem:[#allocation2 + $0xe8] sm:$0xf]
    %v226 = vld [vmem:[#allocation2 + $0xec] sm:$0xf]
    %v227 = vld [vmem:[#allocation2 + $0xf0] sm:$0xf]
    %v228 = vld [vmem:[#allocation2 + $0xf4] sm:$0xf]
    %v229 = vld [vmem:[#allocation2 + $0xf8] sm:$0xf]
    %v230 = vld [vmem:[#allocation2 + $0xfc] sm:$0xf]
    %v231 = vld [vmem:[#allocation5] sm:$0xf]
    %v232 = vld [vmem:[#allocation5 + $0x4] sm:$0xf]
    %v233 = vld [vmem:[#allocation5 + $0x8] sm:$0xf]
    %v234 = vld [vmem:[#allocation5 + $0xc] sm:$0xf]
    %v235 = vld [vmem:[#allocation5 + $0x10] sm:$0xf]
    %v236 = vld [vmem:[#allocation5 + $0x14] sm:$0xf]
    %v237 = vld [vmem:[#allocation5 + $0x18] sm:$0xf]
    %v238 = vld [vmem:[#allocation5 + $0x1c] sm:$0xf]
    %v239 = vld [vmem:[#allocation5 + $0x20] sm:$0xf]
    %v240 = vld [vmem:[#allocation5 + $0x24] sm:$0xf]
    %v241 = vld [vmem:[#allocation5 + $0x28] sm:$0xf]
    %v242 = vld [vmem:[#allocation5 + $0x2c] sm:$0xf]
    %v243 = vld [vmem:[#allocation5 + $0x30] sm:$0xf]
    %v244 = vld [vmem:[#allocation5 + $0x34] sm:$0xf]
    %v245 = vld [vmem:[#allocation5 + $0x38] sm:$0xf]
    %v246 = vld [vmem:[#allocation5 + $0x3c] sm:$0xf]
    %v247 = vld [vmem:[#allocation5 + $0x40] sm:$0xf]
    %v248 = vld [vmem:[#allocation5 + $0x44] sm:$0xf]
    %v249 = vld [vmem:[#allocation5 + $0x48] sm:$0xf]
    %v250 = vld [vmem:[#allocation5 + $0x4c] sm:$0xf]
    %v251 = vld [vmem:[#allocation5 + $0x50] sm:$0xf]
    %v252 = vld [vmem:[#allocation5 + $0x54] sm:$0xf]
    %v253 = vld [vmem:[#allocation5 + $0x58] sm:$0xf]
    %v254 = vld [vmem:[#allocation5 + $0x5c] sm:$0xf]
    %v255 = vld [vmem:[#allocation5 + $0x60] sm:$0xf]
    %v256 = vld [vmem:[#allocation5 + $0x64] sm:$0xf]
    %v257 = vld [vmem:[#allocation5 + $0x68] sm:$0xf]
    %v258 = vld [vmem:[#allocation5 + $0x6c] sm:$0xf]
    %v259 = vld [vmem:[#allocation5 + $0x70] sm:$0xf]
    %v260 = vld [vmem:[#allocation5 + $0x74] sm:$0xf]
    %v261 = vld [vmem:[#allocation5 + $0x78] sm:$0xf]
    %v262 = vld [vmem:[#allocation5 + $0x7c] sm:$0xf]
    %v263 = vld [vmem:[#allocation5 + $0x80] sm:$0xf]
    %v264 = vld [vmem:[#allocation5 + $0x84] sm:$0xf]
    %v265 = vld [vmem:[#allocation5 + $0x88] sm:$0xf]
    %v266 = vld [vmem:[#allocation5 + $0x8c] sm:$0xf]
    %v267 = vld [vmem:[#allocation5 + $0x90] sm:$0xf]
    %v268 = vld [vmem:[#allocation5 + $0x94] sm:$0xf]
    %v269 = vld [vmem:[#allocation5 + $0x98] sm:$0xf]
    %v270 = vld [vmem:[#allocation5 + $0x9c] sm:$0xf]
    %v271 = vld [vmem:[#allocation5 + $0xa0] sm:$0xf]
    %v272 = vld [vmem:[#allocation5 + $0xa4] sm:$0xf]
    %v273 = vld [vmem:[#allocation5 + $0xa8] sm:$0xf]
    %v274 = vld [vmem:[#allocation5 + $0xac] sm:$0xf]
    %v275 = vld [vmem:[#allocation5 + $0xb0] sm:$0xf]
    %v276 = vld [vmem:[#allocation5 + $0xb4] sm:$0xf]
    %v277 = vld [vmem:[#allocation5 + $0xb8] sm:$0xf]
    %v278 = vld [vmem:[#allocation5 + $0xbc] sm:$0xf]
    %v279 = vld [vmem:[#allocation5 + $0xc0] sm:$0xf]
    %v280 = vld [vmem:[#allocation5 + $0xc4] sm:$0xf]
    %v281 = vld [vmem:[#allocation5 + $0xc8] sm:$0xf]
    %v282 = vld [vmem:[#allocation5 + $0xcc] sm:$0xf]
    %v283 = vld [vmem:[#allocation5 + $0xd0] sm:$0xf]
    %v284 = vld [vmem:[#allocation5 + $0xd4] sm:$0xf]
    %v285 = vld [vmem:[#allocation5 + $0xd8] sm:$0xf]
    %v286 = vld [vmem:[#allocation5 + $0xdc] sm:$0xf]
    %v287 = vld [vmem:[#allocation5 + $0xe0] sm:$0xf]
    %v288 = vld [vmem:[#allocation5 + $0xe4] sm:$0xf]
    %v289 = vld [vmem:[#allocation5 + $0xe8] sm:$0xf]
    %v290 = vld [vmem:[#allocation5 + $0xec] sm:$0xf]
    %v291 = vld [vmem:[#allocation5 + $0xf0] sm:$0xf]
    %v292 = vld [vmem:[#allocation5 + $0xf4] sm:$0xf]
    %v293 = vld [vmem:[#allocation5 + $0xf8] sm:$0xf]
    %v294 = vld [vmem:[#allocation5 + $0xfc] sm:$0xf]
    %v359 = vunpack.c.l.b16 %v231
    %v360 = vunpack.c.l.b16 %v232
    %v361 = vunpack.c.l.b16 %v233
    %v362 = vunpack.c.l.b16 %v234
    %v363 = vunpack.c.l.b16 %v235
    %v364 = vunpack.c.l.b16 %v236
    %v365 = vunpack.c.l.b16 %v237
    %v366 = vunpack.c.l.b16 %v238
    %v367 = vunpack.c.l.b16 %v239
    %v368 = vunpack.c.l.b16 %v240
    %v369 = vunpack.c.l.b16 %v241
    %v370 = vunpack.c.l.b16 %v242
    %v371 = vunpack.c.l.b16 %v243
    %v372 = vunpack.c.l.b16 %v244
    %v373 = vunpack.c.l.b16 %v245
    %v374 = vunpack.c.l.b16 %v246
    %v375 = vunpack.c.l.b16 %v247
    %v376 = vunpack.c.l.b16 %v248
    %v377 = vunpack.c.l.b16 %v249
    %v378 = vunpack.c.l.b16 %v250
    %v379 = vunpack.c.l.b16 %v251
    %v380 = vunpack.c.l.b16 %v252
    %v381 = vunpack.c.l.b16 %v253
    %v382 = vunpack.c.l.b16 %v254
    %v383 = vunpack.c.l.b16 %v255
    %v384 = vunpack.c.l.b16 %v256
    %v385 = vunpack.c.l.b16 %v257
    %v386 = vunpack.c.l.b16 %v258
    %v387 = vunpack.c.l.b16 %v259
    %v388 = vunpack.c.l.b16 %v260
    %v389 = vunpack.c.l.b16 %v261
    %v390 = vunpack.c.l.b16 %v262
    %v391 = vunpack.c.l.b16 %v263
    %v392 = vunpack.c.l.b16 %v264
    %v393 = vunpack.c.l.b16 %v265
    %v394 = vunpack.c.l.b16 %v266
    %v395 = vunpack.c.l.b16 %v267
    %v396 = vunpack.c.l.b16 %v268
    %v397 = vunpack.c.l.b16 %v269
    %v398 = vunpack.c.l.b16 %v270
    %v399 = vunpack.c.l.b16 %v271
    %v400 = vunpack.c.l.b16 %v272
    %v401 = vunpack.c.l.b16 %v273
    %v402 = vunpack.c.l.b16 %v274
    %v403 = vunpack.c.l.b16 %v275
    %v404 = vunpack.c.l.b16 %v276
    %v405 = vunpack.c.l.b16 %v277
    %v406 = vunpack.c.l.b16 %v278
    %v407 = vunpack.c.l.b16 %v279
    %v408 = vunpack.c.l.b16 %v280
    %v409 = vunpack.c.l.b16 %v281
    %v410 = vunpack.c.l.b16 %v282
    %v411 = vunpack.c.l.b16 %v283
    %v412 = vunpack.c.l.b16 %v284
    %v413 = vunpack.c.l.b16 %v285
    %v414 = vunpack.c.l.b16 %v286
    %v415 = vunpack.c.l.b16 %v287
    %v416 = vunpack.c.l.b16 %v288
    %v417 = vunpack.c.l.b16 %v289
    %v418 = vunpack.c.l.b16 %v290
    %v419 = vunpack.c.l.b16 %v291
    %v420 = vunpack.c.l.b16 %v292
    %v421 = vunpack.c.l.b16 %v293
    %v422 = vunpack.c.l.b16 %v294
    %v423 = vpack.c.b16 %v360, %v359
    %v424 = vpack.c.b16 %v362, %v361
    %v425 = vpack.c.b16 %v364, %v363
    %v426 = vpack.c.b16 %v366, %v365
    %v427 = vpack.c.b16 %v368, %v367
    %v428 = vpack.c.b16 %v370, %v369
    %v429 = vpack.c.b16 %v372, %v371
    %v430 = vpack.c.b16 %v374, %v373
    %v431 = vpack.c.b16 %v376, %v375
    %v432 = vpack.c.b16 %v378, %v377
    %v433 = vpack.c.b16 %v380, %v379
    %v434 = vpack.c.b16 %v382, %v381
    %v435 = vpack.c.b16 %v384, %v383
    %v436 = vpack.c.b16 %v386, %v385
    %v437 = vpack.c.b16 %v388, %v387
    %v438 = vpack.c.b16 %v390, %v389
    %v439 = vpack.c.b16 %v392, %v391
    %v440 = vpack.c.b16 %v394, %v393
    %v441 = vpack.c.b16 %v396, %v395
    %v442 = vpack.c.b16 %v398, %v397
    %v443 = vpack.c.b16 %v400, %v399
    %v444 = vpack.c.b16 %v402, %v401
    %v445 = vpack.c.b16 %v404, %v403
    %v446 = vpack.c.b16 %v406, %v405
    %v447 = vpack.c.b16 %v408, %v407
    %v448 = vpack.c.b16 %v410, %v409
    %v449 = vpack.c.b16 %v412, %v411
    %v450 = vpack.c.b16 %v414, %v413
    %v451 = vpack.c.b16 %v416, %v415
    %v452 = vpack.c.b16 %v418, %v417
    %v453 = vpack.c.b16 %v420, %v419
    %v454 = vpack.c.b16 %v422, %v421
    %487 = vmatpush.bf16.msra.mxu0 %v430
    %488 = vmatpush.bf16.msra.mxu0 %v429
    %489 = vmatpush.bf16.msra.mxu0 %v428
    %490 = vmatpush.bf16.msra.mxu0 %v427
    %491 = vmatpush.bf16.msra.mxu0 %v426
    %492 = vmatpush.bf16.msra.mxu0 %v425
    %493 = vmatpush.bf16.msra.mxu0 %v424
    %494 = vmatpush.bf16.msra.mxu0 %v423
    %495 = vmatmul.bf16.gmra.mxu0 %v163
    %v496 = vpop.f32.mrf.mxu0
    %v497 = vadd.f32 0.0, %v496
    %v498 = vpop.f32.mrf.mxu0
    %499 = vdwg.mxu0
    %500 = vmatpush.bf16.msra.mxu0 %v438
    %501 = vmatpush.bf16.msra.mxu0 %v437
    %502 = vmatpush.bf16.msra.mxu0 %v436
    %503 = vmatpush.bf16.msra.mxu0 %v435
    %504 = vmatpush.bf16.msra.mxu0 %v434
    %505 = vmatpush.bf16.msra.mxu0 %v433
    %506 = vmatpush.bf16.msra.mxu0 %v432
    %507 = vmatpush.bf16.msra.mxu0 %v431
    %508 = vmatmul.bf16.gmra.mxu0 %v164
    %v509 = vpop.f32.mrf.mxu0
    %v510 = vadd.f32 %v497, %v509
    %v511 = vpop.f32.mrf.mxu0
    %512 = vdwg.mxu0
    %513 = vmatpush.bf16.msra.mxu0 %v446
    %514 = vmatpush.bf16.msra.mxu0 %v445
    %515 = vmatpush.bf16.msra.mxu0 %v444
    %516 = vmatpush.bf16.msra.mxu0 %v443
    %517 = vmatpush.bf16.msra.mxu0 %v442
    %518 = vmatpush.bf16.msra.mxu0 %v441
    %519 = vmatpush.bf16.msra.mxu0 %v440
    %520 = vmatpush.bf16.msra.mxu0 %v439
    %521 = vmatmul.bf16.gmra.mxu0 %v165
    %v522 = vpop.f32.mrf.mxu0
    %v523 = vadd.f32 %v510, %v522
    %v524 = vpop.f32.mrf.mxu0
    %525 = vdwg.mxu0
    %526 = vmatpush.bf16.msra.mxu0 %v454
    %527 = vmatpush.bf16.msra.mxu0 %v453
    %528 = vmatpush.bf16.msra.mxu0 %v452
    %529 = vmatpush.bf16.msra.mxu0 %v451
    %530 = vmatpush.bf16.msra.mxu0 %v450
    %531 = vmatpush.bf16.msra.mxu0 %v449
    %532 = vmatpush.bf16.msra.mxu0 %v448
    %533 = vmatpush.bf16.msra.mxu0 %v447
    %534 = vmatmul.bf16.gmra.mxu0 %v166
    %v535 = vpop.f32.mrf.mxu0
    %v536 = vadd.f32 %v523, %v535
    %v537 = vpop.f32.mrf.mxu0
    %538 = vdwg.mxu0
    %v603 = vunpack.c.l.b16 %v167
    %v604 = vunpack.c.l.b16 %v168
    %v605 = vunpack.c.l.b16 %v169
    %v606 = vunpack.c.l.b16 %v170
    %v607 = vunpack.c.l.b16 %v171
    %v608 = vunpack.c.l.b16 %v172
    %v609 = vunpack.c.l.b16 %v173
    %v610 = vunpack.c.l.b16 %v174
    %v611 = vunpack.c.l.b16 %v175
    %v612 = vunpack.c.l.b16 %v176
    %v613 = vunpack.c.l.b16 %v177
    %v614 = vunpack.c.l.b16 %v178
    %v615 = vunpack.c.l.b16 %v179
    %v616 = vunpack.c.l.b16 %v180
    %v617 = vunpack.c.l.b16 %v181
    %v618 = vunpack.c.l.b16 %v182
    %v619 = vunpack.c.l.b16 %v183
    %v620 = vunpack.c.l.b16 %v184
    %v621 = vunpack.c.l.b16 %v185
    %v622 = vunpack.c.l.b16 %v186
    %v623 = vunpack.c.l.b16 %v187
    %v624 = vunpack.c.l.b16 %v188
    %v625 = vunpack.c.l.b16 %v189
    %v626 = vunpack.c.l.b16 %v190
    %v627 = vunpack.c.l.b16 %v191
    %v628 = vunpack.c.l.b16 %v192
    %v629 = vunpack.c.l.b16 %v193
    %v630 = vunpack.c.l.b16 %v194
    %v631 = vunpack.c.l.b16 %v195
    %v632 = vunpack.c.l.b16 %v196
    %v633 = vunpack.c.l.b16 %v197
    %v634 = vunpack.c.l.b16 %v198
    %v635 = vunpack.c.l.b16 %v199
    %v636 = vunpack.c.l.b16 %v200
    %v637 = vunpack.c.l.b16 %v201
    %v638 = vunpack.c.l.b16 %v202
    %v639 = vunpack.c.l.b16 %v203
    %v640 = vunpack.c.l.b16 %v204
    %v641 = vunpack.c.l.b16 %v205
    %v642 = vunpack.c.l.b16 %v206
    %v643 = vunpack.c.l.b16 %v207
    %v644 = vunpack.c.l.b16 %v208
    %v645 = vunpack.c.l.b16 %v209
    %v646 = vunpack.c.l.b16 %v210
    %v647 = vunpack.c.l.b16 %v211
    %v648 = vunpack.c.l.b16 %v212
    %v649 = vunpack.c.l.b16 %v213
    %v650 = vunpack.c.l.b16 %v214
    %v651 = vunpack.c.l.b16 %v215
    %v652 = vunpack.c.l.b16 %v216
    %v653 = vunpack.c.l.b16 %v217
    %v654 = vunpack.c.l.b16 %v218
    %v655 = vunpack.c.l.b16 %v219
    %v656 = vunpack.c.l.b16 %v220
    %v657 = vunpack.c.l.b16 %v221
    %v658 = vunpack.c.l.b16 %v222
    %v659 = vunpack.c.l.b16 %v223
    %v660 = vunpack.c.l.b16 %v224
    %v661 = vunpack.c.l.b16 %v225
    %v662 = vunpack.c.l.b16 %v226
    %v663 = vunpack.c.l.b16 %v227
    %v664 = vunpack.c.l.b16 %v228
    %v665 = vunpack.c.l.b16 %v229
    %v666 = vunpack.c.l.b16 %v230
    %v667 = vpack.c.b16 %v604, %v603
    %v668 = vpack.c.b16 %v606, %v605
    %v669 = vpack.c.b16 %v608, %v607
    %v670 = vpack.c.b16 %v610, %v609
    %v671 = vpack.c.b16 %v612, %v611
    %v672 = vpack.c.b16 %v614, %v613
    %v673 = vpack.c.b16 %v616, %v615
    %v674 = vpack.c.b16 %v618, %v617
    %v675 = vpack.c.b16 %v620, %v619
    %v676 = vpack.c.b16 %v622, %v621
    %v677 = vpack.c.b16 %v624, %v623
    %v678 = vpack.c.b16 %v626, %v625
    %v679 = vpack.c.b16 %v628, %v627
    %v680 = vpack.c.b16 %v630, %v629
    %v681 = vpack.c.b16 %v632, %v631
    %v682 = vpack.c.b16 %v634, %v633
    %v683 = vpack.c.b16 %v636, %v635
    %v684 = vpack.c.b16 %v638, %v637
    %v685 = vpack.c.b16 %v640, %v639
    %v686 = vpack.c.b16 %v642, %v641
    %v687 = vpack.c.b16 %v644, %v643
    %v688 = vpack.c.b16 %v646, %v645
    %v689 = vpack.c.b16 %v648, %v647
    %v690 = vpack.c.b16 %v650, %v649
    %v691 = vpack.c.b16 %v652, %v651
    %v692 = vpack.c.b16 %v654, %v653
    %v693 = vpack.c.b16 %v656, %v655
    %v694 = vpack.c.b16 %v658, %v657
    %v695 = vpack.c.b16 %v660, %v659
    %v696 = vpack.c.b16 %v662, %v661
    %v697 = vpack.c.b16 %v664, %v663
    %v698 = vpack.c.b16 %v666, %v665
    %731 = vmatpush.bf16.msra.mxu0 %v674
    %732 = vmatpush.bf16.msra.mxu0 %v673
    %733 = vmatpush.bf16.msra.mxu0 %v672
    %734 = vmatpush.bf16.msra.mxu0 %v671
    %735 = vmatpush.bf16.msra.mxu0 %v670
    %736 = vmatpush.bf16.msra.mxu0 %v669
    %737 = vmatpush.bf16.msra.mxu0 %v668
    %738 = vmatpush.bf16.msra.mxu0 %v667
    %739 = vmatmul.bf16.gmra.mxu0 %v163
    %v740 = vpop.f32.mrf.mxu0
    %v741 = vadd.f32 %v536, %v740
    %v742 = vpop.f32.mrf.mxu0
    %743 = vdwg.mxu0
    %744 = vmatpush.bf16.msra.mxu0 %v682
    %745 = vmatpush.bf16.msra.mxu0 %v681
    %746 = vmatpush.bf16.msra.mxu0 %v680
    %747 = vmatpush.bf16.msra.mxu0 %v679
    %748 = vmatpush.bf16.msra.mxu0 %v678
    %749 = vmatpush.bf16.msra.mxu0 %v677
    %750 = vmatpush.bf16.msra.mxu0 %v676
    %751 = vmatpush.bf16.msra.mxu0 %v675
    %752 = vmatmul.bf16.gmra.mxu0 %v164
    %v753 = vpop.f32.mrf.mxu0
    %v754 = vadd.f32 %v741, %v753
    %v755 = vpop.f32.mrf.mxu0
    %756 = vdwg.mxu0
    %757 = vmatpush.bf16.msra.mxu0 %v690
    %758 = vmatpush.bf16.msra.mxu0 %v689
    %759 = vmatpush.bf16.msra.mxu0 %v688
    %760 = vmatpush.bf16.msra.mxu0 %v687
    %761 = vmatpush.bf16.msra.mxu0 %v686
    %762 = vmatpush.bf16.msra.mxu0 %v685
    %763 = vmatpush.bf16.msra.mxu0 %v684
    %764 = vmatpush.bf16.msra.mxu0 %v683
    %765 = vmatmul.bf16.gmra.mxu0 %v165
    %v766 = vpop.f32.mrf.mxu0
    %v767 = vadd.f32 %v754, %v766
    %v768 = vpop.f32.mrf.mxu0
    %769 = vdwg.mxu0
    %770 = vmatpush.bf16.msra.mxu0 %v698
    %771 = vmatpush.bf16.msra.mxu0 %v697
    %772 = vmatpush.bf16.msra.mxu0 %v696
    %773 = vmatpush.bf16.msra.mxu0 %v695
    %774 = vmatpush.bf16.msra.mxu0 %v694
    %775 = vmatpush.bf16.msra.mxu0 %v693
    %776 = vmatpush.bf16.msra.mxu0 %v692
    %777 = vmatpush.bf16.msra.mxu0 %v691
    %778 = vmatmul.bf16.gmra.mxu0 %v166
    %v779 = vpop.f32.mrf.mxu0
    %v780 = vadd.f32 %v767, %v779
    %v781 = vpop.f32.mrf.mxu0
    %782 = vdwg.mxu0
    %784 = vrot.lane.b32.xlu0 %v78, 16
    %v785 = vpop.permute.xlu0 %784
    %v787 = vld [vmem:[%s5] sm:$0x1]
    %v789 = vperm.slane %v787, 0
    %v791 = vmul.f32 %v785, %v789
    %v792 = vadd.f32 %v780, %v791
    %v793 = vld [vmem:[#allocation7] sm:$0xf]
    %v794 = vld [vmem:[#allocation7 + $0x4] sm:$0xf]
    %v795 = vld [vmem:[#allocation7 + $0x8] sm:$0xf]
    %v796 = vld [vmem:[#allocation7 + $0xc] sm:$0xf]
    %v797 = vld [vmem:[#allocation7 + $0x10] sm:$0xf]
    %v798 = vld [vmem:[#allocation7 + $0x14] sm:$0xf]
    %v799 = vld [vmem:[#allocation7 + $0x18] sm:$0xf]
    %v800 = vld [vmem:[#allocation7 + $0x1c] sm:$0xf]
    %v801 = vld [vmem:[#allocation7 + $0x20] sm:$0xf]
    %v802 = vld [vmem:[#allocation7 + $0x24] sm:$0xf]
    %v803 = vld [vmem:[#allocation7 + $0x28] sm:$0xf]
    %v804 = vld [vmem:[#allocation7 + $0x2c] sm:$0xf]
    %v805 = vld [vmem:[#allocation7 + $0x30] sm:$0xf]
    %v806 = vld [vmem:[#allocation7 + $0x34] sm:$0xf]
    %v807 = vld [vmem:[#allocation7 + $0x38] sm:$0xf]
    %v808 = vld [vmem:[#allocation7 + $0x3c] sm:$0xf]
    %v809 = vpack.c.bf16 %v792, %v792
    %v810 = vunpack.c.l.bf16 %v809
    %v811 = vsub.f32 %v792, %v810
    %v812 = vpack.c.bf16 %v811, %v811
    %v829 = vunpack.c.l.b16 %v793
    %v830 = vunpack.c.l.b16 %v794
    %v831 = vunpack.c.l.b16 %v795
    %v832 = vunpack.c.l.b16 %v796
    %v833 = vunpack.c.l.b16 %v797
    %v834 = vunpack.c.l.b16 %v798
    %v835 = vunpack.c.l.b16 %v799
    %v836 = vunpack.c.l.b16 %v800
    %v837 = vunpack.c.l.b16 %v801
    %v838 = vunpack.c.l.b16 %v802
    %v839 = vunpack.c.l.b16 %v803
    %v840 = vunpack.c.l.b16 %v804
    %v841 = vunpack.c.l.b16 %v805
    %v842 = vunpack.c.l.b16 %v806
    %v843 = vunpack.c.l.b16 %v807
    %v844 = vunpack.c.l.b16 %v808
    %v845 = vpack.c.b16 %v830, %v829
    %v846 = vpack.c.b16 %v832, %v831
    %v847 = vpack.c.b16 %v834, %v833
    %v848 = vpack.c.b16 %v836, %v835
    %v849 = vpack.c.b16 %v838, %v837
    %v850 = vpack.c.b16 %v840, %v839
    %v851 = vpack.c.b16 %v842, %v841
    %v852 = vpack.c.b16 %v844, %v843
    %861 = vmatpush.bf16.msra.mxu0 %v852
    %862 = vmatpush.bf16.msra.mxu0 %v851
    %863 = vmatpush.bf16.msra.mxu0 %v850
    %864 = vmatpush.bf16.msra.mxu0 %v849
    %865 = vmatpush.bf16.msra.mxu0 %v848
    %866 = vmatpush.bf16.msra.mxu0 %v847
    %867 = vmatpush.bf16.msra.mxu0 %v846
    %868 = vmatpush.bf16.msra.mxu0 %v845
    %869 = vmatmul.bf16.gmra.mxu0 %v812
    %v870 = vpop.f32.mrf.mxu0
    %v871 = vadd.f32 0.0, %v870
    %v872 = vpop.f32.mrf.mxu0
    %873 = vdwg.mxu0
    %874 = vmatpush.bf16.msra.mxu0 %v852
    %875 = vmatpush.bf16.msra.mxu0 %v851
    %876 = vmatpush.bf16.msra.mxu0 %v850
    %877 = vmatpush.bf16.msra.mxu0 %v849
    %878 = vmatpush.bf16.msra.mxu0 %v848
    %879 = vmatpush.bf16.msra.mxu0 %v847
    %880 = vmatpush.bf16.msra.mxu0 %v846
    %881 = vmatpush.bf16.msra.mxu0 %v845
    %882 = vmatmul.bf16.gmra.mxu0 %v809
    %v883 = vpop.f32.mrf.mxu0
    %v884 = vadd.f32 %v871, %v883
    %v885 = vpop.f32.mrf.mxu0
    %886 = vdwg.mxu0
    %v887 = vmul.f32 %v884, 0.03125
    %v888 = vsub.f32 %v792, %v887
    %v889 = vmul.f32 %v888, %v888
    %v890 = vpack.c.bf16 %v889, %v889
    %v891 = vunpack.c.l.bf16 %v890
    %v892 = vsub.f32 %v889, %v891
    %v893 = vpack.c.bf16 %v892, %v892
    %894 = vmatpush.bf16.msra.mxu0 %v852
    %895 = vmatpush.bf16.msra.mxu0 %v851
    %896 = vmatpush.bf16.msra.mxu0 %v850
    %897 = vmatpush.bf16.msra.mxu0 %v849
    %898 = vmatpush.bf16.msra.mxu0 %v848
    %899 = vmatpush.bf16.msra.mxu0 %v847
    %900 = vmatpush.bf16.msra.mxu0 %v846
    %901 = vmatpush.bf16.msra.mxu0 %v845
    %902 = vmatmul.bf16.gmra.mxu0 %v893
    %v903 = vpop.f32.mrf.mxu0
    %v904 = vadd.f32 0.0, %v903
    %v905 = vpop.f32.mrf.mxu0
    %906 = vdwg.mxu0
    %907 = vmatpush.bf16.msra.mxu0 %v852
    %908 = vmatpush.bf16.msra.mxu0 %v851
    %909 = vmatpush.bf16.msra.mxu0 %v850
    %910 = vmatpush.bf16.msra.mxu0 %v849
    %911 = vmatpush.bf16.msra.mxu0 %v848
    %912 = vmatpush.bf16.msra.mxu0 %v847
    %913 = vmatpush.bf16.msra.mxu0 %v846
    %914 = vmatpush.bf16.msra.mxu0 %v845
    %915 = vmatmul.bf16.gmra.mxu0 %v890
    %v916 = vpop.f32.mrf.mxu0
    %v917 = vadd.f32 %v904, %v916
    %v918 = vpop.f32.mrf.mxu0
    %919 = vdwg.mxu0
    %v920 = vmul.f32 %v917, 0.03125
    %v921 = vadd.f32 %v920, 1e-05
    %v922 = vrsqrt.pop %v921
    %v923 = vmul.f32 %v922, %v921
    %v924 = vmul.f32 %v923, %v922
    %v925 = vmul.f32 0.5, %v924
    %v926 = vsub.f32 1.5, %v925
    %v927 = vmul.f32 %v922, %v926
    %vm928 = vweird.f32 %v921
    %vm929 = vweird.f32 %v922
    %vm930 = vmor %vm928, %vm929
    %v931 = vsel %vm930, %v922, %v927
    %v932 = vmul.f32 %v888, %v931
    %v933 = vld [vmem:[%s6] sm:$0x1]
    %v935 = vperm.slane %v933, 0
    %v937 = vmul.f32 %v932, %v935
    %v938 = vld [vmem:[%s7] sm:$0x1]
    %v940 = vperm.slane %v938, 0
    %v942 = vadd.f32 %v937, %v940
    %943 = vst [vmem:[#allocation8] sm:$0xff] %v942
    // Predicated region
    $region46: #{tpu_custom_call.1} parent=1 // pred_check
      _
    $region47: #{tpu_custom_call.1} parent=1 // pred_check_branch
      %945 = sbr.rel (0) target = $region49
    $region48: #{tpu_custom_call.1} parent=1 // pred_region
      %947 = vsyncadd [#allocation4], 0
      %s949 = sshll.u32 [#allocation8], 4
      %s950 = int_to_ptr.vmem [resolvable:$true] %s949
      %s951 = sshll.u32 %s8, 4
      %s952 = int_to_ptr.hbm [resolvable:$true] %s951
      %954 = dma.vmem_to_hbm [thread:$0]  %s950, 128, %s952, [#allocation4]
    $region49: #{tpu_custom_call.1} parent=1 // pred_fallthru
      _
    // Predicated region
    $region50: #{tpu_custom_call.1} parent=1 // pred_check
      _
    $region51: #{tpu_custom_call.1} parent=1 // pred_check_branch
      %956 = sbr.rel (0) target = $region53
    $region52: #{tpu_custom_call.1} parent=1 // pred_region
      %958 = dma.done [#allocation4], 128
    $region53: #{tpu_custom_call.1} parent=1 // pred_fallthru
      _
    %959 = vsyncpa [#allocation3], 1
    %960 = vsyncpa [#allocation6], 1
    %961 = vsyncpa [#allocation4], 1

</llo_original>
